<compile_context>
chip_gen: v6e
topology: v6e:2x2x1
jax: 0.10.0
libtpu: 0.0.40
codegen_flags: <defaults>
</compile_context>

<pallas_src>
import functools
import math

import jax
import jax.numpy as jnp
from jax import lax
from jax.experimental import pallas as pl
from jax.experimental.pallas import tpu as pltpu

NEG_INF = -1e30  # large finite negative: avoids exp(-inf - -inf) NaN hazards


def causal_self_attention_kernel(x_ref, wq_ref, bq_ref, wk_ref, bk_ref,
                                 wp_ref, bp_ref, o_ref,
                                 q_cache, k_cache, y_ref, *, n_head):
    """One grid step = one (batch, q-block): project this block's q/k rows, append to
    the VMEM caches, run online-softmax causal attention over the prefix, out-project."""
    qi = pl.program_id(1)
    tq, C = x_ref.shape
    hd = C // n_head

    # ---- fused q / (pre-scaled) k projection for this block's rows (once per row) ----
    xb = x_ref[...].astype(jnp.bfloat16)
    q_blk = (jnp.dot(xb, wq_ref[...], preferred_element_type=jnp.float32)
             + bq_ref[...]).astype(jnp.bfloat16)          # (tq, C); also serves as v
    k_blk = (jnp.dot(xb, wk_ref[...], preferred_element_type=jnp.float32)
             + bk_ref[...]).astype(jnp.bfloat16)          # (tq, C); 1/sqrt(hd) pre-folded

    row0 = pl.multiple_of(qi * tq, tq)
    q_cache[pl.ds(row0, tq), :] = q_blk
    k_cache[pl.ds(row0, tq), :] = k_blk

    # ---- flash-style attention over kv chunks 0..qi (causal block skipping) ----
    q_rows = row0 + lax.broadcasted_iota(jnp.int32, (tq, tq), 0)   # global q row ids
    k_cols = lax.broadcasted_iota(jnp.int32, (tq, tq), 1)          # chunk-local col ids
    q_heads = [q_blk[:, h * hd:(h + 1) * hd] for h in range(n_head)]

    def kv_step(j, carry):
        k_start = pl.multiple_of(j * tq, tq)
        k_rows = k_cache[pl.ds(k_start, tq), :]          # (tq, C) bf16, one read per chunk
        v_rows = q_cache[pl.ds(k_start, tq), :]          # v = q projection (reference bug)
        mask = q_rows >= (k_start + k_cols)
        new_carry = []
        for h in range(n_head):                          # static unroll; heads are few
            m_prev, l_prev, acc_prev = carry[h]
            hs = slice(h * hd, (h + 1) * hd)
            s = jnp.einsum('qd,kd->qk', q_heads[h], k_rows[:, hs],
                           preferred_element_type=jnp.float32)     # scale already in k
            s = jnp.where(mask, s, NEG_INF)
            m_new = jnp.maximum(m_prev, s.max(axis=-1, keepdims=True))
            alpha = jnp.exp(m_prev - m_new)
            p = jnp.exp(s - m_new)
            l_new = alpha * l_prev + p.sum(axis=-1, keepdims=True)
            acc_new = alpha * acc_prev + jnp.dot(
                p.astype(jnp.bfloat16), v_rows[:, hs],
                preferred_element_type=jnp.float32)
            new_carry.append((m_new, l_new, acc_new))
        return tuple(new_carry)

    init = tuple((jnp.full((tq, 1), NEG_INF, jnp.float32),
                  jnp.zeros((tq, 1), jnp.float32),
                  jnp.zeros((tq, hd), jnp.float32)) for _ in range(n_head))
    final = lax.fori_loop(0, qi + 1, kv_step, init)      # dynamic bound: skip masked blocks

    # ---- per-head normalize into one (tq, C) f32 scratch (no concatenate) ----
    for h in range(n_head):
        _, l_f, acc_f = final[h]
        y_ref[:, h * hd:(h + 1) * hd] = acc_f * pl.reciprocal(l_f, approx=True)

    # ---- fused output projection (single wide-K MXU dot) ----
    out = (jnp.dot(y_ref[...].astype(jnp.bfloat16), wp_ref[...],
                   preferred_element_type=jnp.float32) + bp_ref[...])
    o_ref[...] = out.astype(o_ref.dtype)


def causal_self_attention(x, w_attn, b_attn, w_proj, b_proj, *, n_head, q_block=128):
    B, T, C = x.shape
    assert C % n_head == 0
    hd = C // n_head
    scale = 1.0 / math.sqrt(hd)

    # v = q in the reference forward -> the v rows of c_attn are dead: drop them.
    # Pre-transpose to (in, out), fold the score scale into k (q doubles as v so it
    # cannot carry the scale), and cast weights to bf16 for the MXU.
    w_q_t = w_attn[:C, :].T.astype(jnp.bfloat16)                  # (C, C)
    w_k_t = (w_attn[C:2 * C, :].T * scale).astype(jnp.bfloat16)   # (C, C), pre-scaled
    b_q = b_attn[:C].reshape(1, C).astype(jnp.float32)
    b_k = (b_attn[C:2 * C] * scale).reshape(1, C).astype(jnp.float32)
    w_p_t = w_proj.T.astype(jnp.bfloat16)                         # (C, C)
    b_p = b_proj.reshape(1, C).astype(jnp.float32)

    # q-block size: 128 keeps per-step VMEM small enough for v7x (64 MiB, 32 MiB scoped
    # default) while giving the pipeline many steps; tiny sequences use a single block.
    tq = q_block if T % q_block == 0 else T
    nq = T // tq

    kernel = functools.partial(causal_self_attention_kernel, n_head=n_head)
    return pl.pallas_call(
        kernel,
        out_shape=jax.ShapeDtypeStruct((B, T, C), x.dtype),
        grid=(B, nq),
        in_specs=[
            pl.BlockSpec((None, tq, C), lambda b, q: (b, q, 0)),  # x rows of this q block
            # Weights / biases use constant index maps -> fetched once and kept resident
            # (pipeline_mode=pl.Buffered(1) could additionally drop their second buffer).
            pl.BlockSpec((C, C), lambda b, q: (0, 0)),            # W_q^T
            pl.BlockSpec((1, C), lambda b, q: (0, 0)),            # b_q
            pl.BlockSpec((C, C), lambda b, q: (0, 0)),            # W_k^T (pre-scaled)
            pl.BlockSpec((1, C), lambda b, q: (0, 0)),            # b_k (pre-scaled)
            pl.BlockSpec((C, C), lambda b, q: (0, 0)),            # W_proj^T
            pl.BlockSpec((1, C), lambda b, q: (0, 0)),            # b_proj
        ],
        out_specs=pl.BlockSpec((None, tq, C), lambda b, q: (b, q, 0)),
        scratch_shapes=[
            pltpu.VMEM((T, C), jnp.bfloat16),   # q-projection cache (also the v source)
            pltpu.VMEM((T, C), jnp.bfloat16),   # scaled k-projection cache
            pltpu.VMEM((tq, C), jnp.float32),   # per-q-block y, heads written in place
        ],
        compiler_params=pltpu.CompilerParams(
            # batch axis independent (megacore-shardable); q-block axis must stay
            # sequential because the projection caches carry state across it.
            dimension_semantics=("parallel", "arbitrary")),
    )(x, w_q_t, b_q, w_k_t, b_k, w_p_t, b_p)


def reference(x, w_attn, b_attn, w_proj, b_proj, n_head):
    """Pure-JAX f32 port of the PyTorch forward (incl. the v=q bug), eval-mode dropout."""
    B, T, C = x.shape
    hd = C // n_head
    qkv = x @ w_attn.T + b_attn
    q, k, _v = jnp.split(qkv, 3, axis=2)
    q = q.reshape(B, T, n_head, hd).transpose(0, 2, 1, 3)
    k = k.reshape(B, T, n_head, hd).transpose(0, 2, 1, 3)
    v = q
    att = (q @ jnp.swapaxes(k, -2, -1)) * (1.0 / math.sqrt(hd))
    mask = jnp.tril(jnp.ones((T, T), dtype=bool))
    att = jnp.where(mask, att, -jnp.inf)
    att = jax.nn.softmax(att, axis=-1)
    y = att @ v
    y = y.transpose(0, 2, 1, 3).reshape(B, T, C)
    return y @ w_proj.T + b_proj


if __name__ == "__main__":
    B, T = 2, 8
    n_embd, n_head = 32, 4

    key = jax.random.PRNGKey(0)
    kx, k1, k2, k3, k4 = jax.random.split(key, 5)

    x = jax.random.normal(kx, (B, T, n_embd), dtype=jnp.float32)

    # nn.Linear default init: U(-1/sqrt(fan_in), 1/sqrt(fan_in)), deterministic here.
    bound = 1.0 / math.sqrt(n_embd)
    w_attn = jax.random.uniform(k1, (3 * n_embd, n_embd), jnp.float32, -bound, bound)
    b_attn = jax.random.uniform(k2, (3 * n_embd,), jnp.float32, -bound, bound)
    w_proj = jax.random.uniform(k3, (n_embd, n_embd), jnp.float32, -bound, bound)
    b_proj = jax.random.uniform(k4, (n_embd,), jnp.float32, -bound, bound)

    out = causal_self_attention(x, w_attn, b_attn, w_proj, b_proj, n_head=n_head)
    out = jax.block_until_ready(out)

    ref = reference(x, w_attn, b_attn, w_proj, b_proj, n_head)
    assert out.shape == (B, T, n_embd)
    # bf16 MXU inputs + approx reciprocal vs a pure-f32 reference -> ~1e-3-level diffs.
    assert jnp.allclose(out, ref, atol=2e-2, rtol=2e-2), "mismatch vs pure-JAX reference"

    print("KERNEL_OK")
</pallas_src>

<mosaic_0001>
module attributes {stable_mosaic.version = 11 : i64} {
  func.func @causal_self_attention_kernel(%arg0: i32, %arg1: i32, %arg2: memref<1x8x32xf32, #tpu.memory_space<vmem>>, %arg3: memref<32x32xbf16, #tpu.memory_space<vmem>>, %arg4: memref<1x32xf32, #tpu.memory_space<vmem>>, %arg5: memref<32x32xbf16, #tpu.memory_space<vmem>>, %arg6: memref<1x32xf32, #tpu.memory_space<vmem>>, %arg7: memref<32x32xbf16, #tpu.memory_space<vmem>>, %arg8: memref<1x32xf32, #tpu.memory_space<vmem>>, %arg9: memref<1x8x32xf32, #tpu.memory_space<vmem>>, %arg10: memref<8x32xbf16, #tpu.memory_space<vmem>>, %arg11: memref<8x32xbf16, #tpu.memory_space<vmem>>, %arg12: memref<8x32xf32, #tpu.memory_space<vmem>>) attributes {dimension_semantics = [#tpu.dimension_semantics<parallel>, #tpu.dimension_semantics<arbitrary>], iteration_bounds = array<i64: 2, 1>, scalar_prefetch = 0 : i64, scratch_operands = 3 : i64, tpu.core_type = #tpu.core_type<tc>, window_params = [{transform_indices = @transform_0, window_bounds = array<i64: 1, 8, 32>}, {pipeline_mode = #tpu.pipeline_mode<synchronous>, transform_indices = @transform_1, window_bounds = array<i64: 32, 32>}, {pipeline_mode = #tpu.pipeline_mode<synchronous>, transform_indices = @transform_2, window_bounds = array<i64: 1, 32>}, {pipeline_mode = #tpu.pipeline_mode<synchronous>, transform_indices = @transform_3, window_bounds = array<i64: 32, 32>}, {pipeline_mode = #tpu.pipeline_mode<synchronous>, transform_indices = @transform_4, window_bounds = array<i64: 1, 32>}, {pipeline_mode = #tpu.pipeline_mode<synchronous>, transform_indices = @transform_5, window_bounds = array<i64: 32, 32>}, {pipeline_mode = #tpu.pipeline_mode<synchronous>, transform_indices = @transform_6, window_bounds = array<i64: 1, 32>}, {transform_indices = @transform_7, window_bounds = array<i64: 1, 8, 32>}]} {
    %c0 = arith.constant 0 : index
    %c0_0 = arith.constant 0 : index
    %c0_1 = arith.constant 0 : index
    %0 = vector.load %arg2[%c0, %c0_0, %c0_1] : memref<1x8x32xf32, #tpu.memory_space<vmem>>, vector<1x8x32xf32>
    %1 = vector.shape_cast %0 : vector<1x8x32xf32> to vector<8x32xf32>
    %2 = arith.truncf %1 : vector<8x32xf32> to vector<8x32xbf16>
    %c0_2 = arith.constant 0 : index
    %c0_3 = arith.constant 0 : index
    %3 = vector.load %arg3[%c0_2, %c0_3] : memref<32x32xbf16, #tpu.memory_space<vmem>>, vector<32x32xbf16>
    %cst = arith.constant dense<0.000000e+00> : vector<8x32xf32>
    %4 = tpu.matmul %2, %3, %cst {dimension_numbers = #tpu.dot_dimension_numbers<[1], [0], [0], [1], [0, 0, 1, 1], [], []>} : vector<8x32xbf16>, vector<32x32xbf16>, vector<8x32xf32> -> vector<8x32xf32>
    %c0_4 = arith.constant 0 : index
    %c0_5 = arith.constant 0 : index
    %5 = vector.load %arg4[%c0_4, %c0_5] : memref<1x32xf32, #tpu.memory_space<vmem>>, vector<1x32xf32>
    %6 = vector.broadcast %5 : vector<1x32xf32> to vector<8x32xf32>
    %7 = arith.addf %4, %6 : vector<8x32xf32>
    %8 = arith.truncf %7 : vector<8x32xf32> to vector<8x32xbf16>
    %c0_6 = arith.constant 0 : index
    %c0_7 = arith.constant 0 : index
    %9 = vector.load %arg5[%c0_6, %c0_7] : memref<32x32xbf16, #tpu.memory_space<vmem>>, vector<32x32xbf16>
    %cst_8 = arith.constant dense<0.000000e+00> : vector<8x32xf32>
    %10 = tpu.matmul %2, %9, %cst_8 {dimension_numbers = #tpu.dot_dimension_numbers<[1], [0], [0], [1], [0, 0, 1, 1], [], []>} : vector<8x32xbf16>, vector<32x32xbf16>, vector<8x32xf32> -> vector<8x32xf32>
    %c0_9 = arith.constant 0 : index
    %c0_10 = arith.constant 0 : index
    %11 = vector.load %arg6[%c0_9, %c0_10] : memref<1x32xf32, #tpu.memory_space<vmem>>, vector<1x32xf32>
    %12 = vector.broadcast %11 : vector<1x32xf32> to vector<8x32xf32>
    %13 = arith.addf %10, %12 : vector<8x32xf32>
    %14 = arith.truncf %13 : vector<8x32xf32> to vector<8x32xbf16>
    %c8_i32 = arith.constant 8 : i32
    %15 = arith.muli %arg1, %c8_i32 : i32
    %16 = tpu.assume_multiple %15, 8 : i32
    %17 = arith.index_cast %16 : i32 to index
    %c0_11 = arith.constant 0 : index
    %18 = vector.load %arg10[%17, %c0_11] : memref<8x32xbf16, #tpu.memory_space<vmem>>, vector<8x32xbf16>
    tpu.vector_store %arg10[%17, %c0_11], %8 {strides = array<i32>} : memref<8x32xbf16, #tpu.memory_space<vmem>>, vector<8x32xbf16>,
    %19 = arith.index_cast %16 : i32 to index
    %c0_12 = arith.constant 0 : index
    %20 = vector.load %arg11[%19, %c0_12] : memref<8x32xbf16, #tpu.memory_space<vmem>>, vector<8x32xbf16>
    tpu.vector_store %arg11[%19, %c0_12], %14 {strides = array<i32>} : memref<8x32xbf16, #tpu.memory_space<vmem>>, vector<8x32xbf16>,
    %21 = tpu.iota {dimensions = array<i32: 0>} : vector<8x8xi32>
    %22 = vector.broadcast %16 : i32 to vector<8x8xi32>
    %23 = arith.addi %22, %21 : vector<8x8xi32>
    %24 = tpu.iota {dimensions = array<i32: 1>} : vector<8x8xi32>
    %25 = vector.extract_strided_slice %8 {offsets = [0, 0], sizes = [8, 8], strides = [1, 1]} : vector<8x32xbf16> to vector<8x8xbf16>
    %26 = vector.extract_strided_slice %8 {offsets = [0, 8], sizes = [8, 8], strides = [1, 1]} : vector<8x32xbf16> to vector<8x8xbf16>
    %27 = vector.extract_strided_slice %8 {offsets = [0, 16], sizes = [8, 8], strides = [1, 1]} : vector<8x32xbf16> to vector<8x8xbf16>
    %28 = vector.extract_strided_slice %8 {offsets = [0, 24], sizes = [8, 8], strides = [1, 1]} : vector<8x32xbf16> to vector<8x8xbf16>
    %cst_13 = arith.constant -1.000000e+30 : f32
    %29 = vector.broadcast %cst_13 : f32 to vector<8x1xf32>
    %cst_14 = arith.constant 0.000000e+00 : f32
    %30 = vector.broadcast %cst_14 : f32 to vector<8x1xf32>
    %cst_15 = arith.constant 0.000000e+00 : f32
    %31 = vector.broadcast %cst_15 : f32 to vector<8x8xf32>
    %cst_16 = arith.constant -1.000000e+30 : f32
    %32 = vector.broadcast %cst_16 : f32 to vector<8x1xf32>
    %cst_17 = arith.constant 0.000000e+00 : f32
    %33 = vector.broadcast %cst_17 : f32 to vector<8x1xf32>
    %cst_18 = arith.constant 0.000000e+00 : f32
    %34 = vector.broadcast %cst_18 : f32 to vector<8x8xf32>
    %cst_19 = arith.constant -1.000000e+30 : f32
    %35 = vector.broadcast %cst_19 : f32 to vector<8x1xf32>
    %cst_20 = arith.constant 0.000000e+00 : f32
    %36 = vector.broadcast %cst_20 : f32 to vector<8x1xf32>
    %cst_21 = arith.constant 0.000000e+00 : f32
    %37 = vector.broadcast %cst_21 : f32 to vector<8x8xf32>
    %cst_22 = arith.constant -1.000000e+30 : f32
    %38 = vector.broadcast %cst_22 : f32 to vector<8x1xf32>
    %cst_23 = arith.constant 0.000000e+00 : f32
    %39 = vector.broadcast %cst_23 : f32 to vector<8x1xf32>
    %cst_24 = arith.constant 0.000000e+00 : f32
    %40 = vector.broadcast %cst_24 : f32 to vector<8x8xf32>
    %c1_i32 = arith.constant 1 : i32
    %41 = arith.addi %arg1, %c1_i32 : i32
    %c0_i32 = arith.constant 0 : i32
    %42 = arith.subi %41, %c0_i32 : i32
    %43 = arith.addi %c0_i32, %42 : i32
    %c1_i32_25 = arith.constant 1 : i32
    %44:12 = scf.for %arg13 = %c0_i32 to %43 step %c1_i32_25 iter_args(%arg14 = %29, %arg15 = %30, %arg16 = %31, %arg17 = %32, %arg18 = %33, %arg19 = %34, %arg20 = %35, %arg21 = %36, %arg22 = %37, %arg23 = %38, %arg24 = %39, %arg25 = %40) -> (vector<8x1xf32>, vector<8x1xf32>, vector<8x8xf32>, vector<8x1xf32>, vector<8x1xf32>, vector<8x8xf32>, vector<8x1xf32>, vector<8x1xf32>, vector<8x8xf32>, vector<8x1xf32>, vector<8x1xf32>, vector<8x8xf32>)  : i32 {
      %c8_i32_41 = arith.constant 8 : i32
      %71 = arith.muli %arg13, %c8_i32_41 : i32
      %72 = tpu.assume_multiple %71, 8 : i32
      %73 = arith.index_cast %72 : i32 to index
      %c0_42 = arith.constant 0 : index
      %74 = vector.load %arg11[%73, %c0_42] : memref<8x32xbf16, #tpu.memory_space<vmem>>, vector<8x32xbf16>
      %75 = arith.index_cast %72 : i32 to index
      %c0_43 = arith.constant 0 : index
      %76 = vector.load %arg10[%75, %c0_43] : memref<8x32xbf16, #tpu.memory_space<vmem>>, vector<8x32xbf16>
      %77 = vector.broadcast %72 : i32 to vector<8x8xi32>
      %78 = arith.addi %77, %24 : vector<8x8xi32>
      %79 = arith.cmpi sge, %23, %78 : vector<8x8xi32>
      %80 = vector.extract_strided_slice %74 {offsets = [0, 0], sizes = [8, 8], strides = [1, 1]} : vector<8x32xbf16> to vector<8x8xbf16>
      "tpu.trace_start"() <{level = 10 : i32, message = "qd,kd->qk"}> : () -> ()
      %cst_44 = arith.constant dense<0.000000e+00> : vector<8x8xf32>
      %81 = tpu.matmul %25, %80, %cst_44 {dimension_numbers = #tpu.dot_dimension_numbers<[1], [1], [0], [0], [0, 0, 1, 0], [], []>} : vector<8x8xbf16>, vector<8x8xbf16>, vector<8x8xf32> -> vector<8x8xf32>
      %cst_45 = arith.constant -1.000000e+30 : f32
      "tpu.trace_stop"() : () -> ()
      %82 = vector.broadcast %cst_45 : f32 to vector<8x8xf32>
      %83 = arith.select %79, %81, %82 : vector<8x8xi1>, vector<8x8xf32>
      %cst_46 = arith.constant dense<0xFF800000> : vector<8xf32>
      %84 = vector.multi_reduction <maximumf>, %83, %cst_46 [1] : vector<8x8xf32> to vector<8xf32>
      %85 = vector.shape_cast %84 : vector<8xf32> to vector<8x1xf32>
      %86 = arith.maximumf %arg14, %85 : vector<8x1xf32>
      %87 = arith.subf %arg14, %86 : vector<8x1xf32>
      %88 = math.exp %87 : vector<8x1xf32>
      %89 = vector.broadcast %86 : vector<8x1xf32> to vector<8x8xf32>
      %90 = arith.subf %83, %89 : vector<8x8xf32>
      %91 = math.exp %90 : vector<8x8xf32>
      %92 = arith.mulf %88, %arg15 : vector<8x1xf32>
      %cst_47 = arith.constant dense<0.000000e+00> : vector<8xf32>
      %93 = vector.multi_reduction <add>, %91, %cst_47 [1] : vector<8x8xf32> to vector<8xf32>
      %94 = vector.shape_cast %93 : vector<8xf32> to vector<8x1xf32>
      %95 = arith.addf %92, %94 : vector<8x1xf32>
      %96 = vector.broadcast %88 : vector<8x1xf32> to vector<8x8xf32>
      %97 = arith.mulf %96, %arg16 : vector<8x8xf32>
      %98 = arith.truncf %91 : vector<8x8xf32> to vector<8x8xbf16>
      %99 = vector.extract_strided_slice %76 {offsets = [0, 0], sizes = [8, 8], strides = [1, 1]} : vector<8x32xbf16> to vector<8x8xbf16>
      %cst_48 = arith.constant dense<0.000000e+00> : vector<8x8xf32>
      %100 = tpu.matmul %98, %99, %cst_48 {dimension_numbers = #tpu.dot_dimension_numbers<[1], [0], [0], [1], [0, 0, 1, 1], [], []>} : vector<8x8xbf16>, vector<8x8xbf16>, vector<8x8xf32> -> vector<8x8xf32>
      %101 = arith.addf %97, %100 : vector<8x8xf32>
      %102 = vector.extract_strided_slice %74 {offsets = [0, 8], sizes = [8, 8], strides = [1, 1]} : vector<8x32xbf16> to vector<8x8xbf16>
      "tpu.trace_start"() <{level = 10 : i32, message = "qd,kd->qk"}> : () -> ()
      %cst_49 = arith.constant dense<0.000000e+00> : vector<8x8xf32>
      %103 = tpu.matmul %26, %102, %cst_49 {dimension_numbers = #tpu.dot_dimension_numbers<[1], [1], [0], [0], [0, 0, 1, 0], [], []>} : vector<8x8xbf16>, vector<8x8xbf16>, vector<8x8xf32> -> vector<8x8xf32>
      %cst_50 = arith.constant -1.000000e+30 : f32
      "tpu.trace_stop"() : () -> ()
      %104 = vector.broadcast %cst_50 : f32 to vector<8x8xf32>
      %105 = arith.select %79, %103, %104 : vector<8x8xi1>, vector<8x8xf32>
      %cst_51 = arith.constant dense<0xFF800000> : vector<8xf32>
      %106 = vector.multi_reduction <maximumf>, %105, %cst_51 [1] : vector<8x8xf32> to vector<8xf32>
      %107 = vector.shape_cast %106 : vector<8xf32> to vector<8x1xf32>
      %108 = arith.maximumf %arg17, %107 : vector<8x1xf32>
      %109 = arith.subf %arg17, %108 : vector<8x1xf32>
      %110 = math.exp %109 : vector<8x1xf32>
      %111 = vector.broadcast %108 : vector<8x1xf32> to vector<8x8xf32>
      %112 = arith.subf %105, %111 : vector<8x8xf32>
      %113 = math.exp %112 : vector<8x8xf32>
      %114 = arith.mulf %110, %arg18 : vector<8x1xf32>
      %cst_52 = arith.constant dense<0.000000e+00> : vector<8xf32>
      %115 = vector.multi_reduction <add>, %113, %cst_52 [1] : vector<8x8xf32> to vector<8xf32>
      %116 = vector.shape_cast %115 : vector<8xf32> to vector<8x1xf32>
      %117 = arith.addf %114, %116 : vector<8x1xf32>
      %118 = vector.broadcast %110 : vector<8x1xf32> to vector<8x8xf32>
      %119 = arith.mulf %118, %arg19 : vector<8x8xf32>
      %120 = arith.truncf %113 : vector<8x8xf32> to vector<8x8xbf16>
      %121 = vector.extract_strided_slice %76 {offsets = [0, 8], sizes = [8, 8], strides = [1, 1]} : vector<8x32xbf16> to vector<8x8xbf16>
      %cst_53 = arith.constant dense<0.000000e+00> : vector<8x8xf32>
      %122 = tpu.matmul %120, %121, %cst_53 {dimension_numbers = #tpu.dot_dimension_numbers<[1], [0], [0], [1], [0, 0, 1, 1], [], []>} : vector<8x8xbf16>, vector<8x8xbf16>, vector<8x8xf32> -> vector<8x8xf32>
      %123 = arith.addf %119, %122 : vector<8x8xf32>
      %124 = vector.extract_strided_slice %74 {offsets = [0, 16], sizes = [8, 8], strides = [1, 1]} : vector<8x32xbf16> to vector<8x8xbf16>
      "tpu.trace_start"() <{level = 10 : i32, message = "qd,kd->qk"}> : () -> ()
      %cst_54 = arith.constant dense<0.000000e+00> : vector<8x8xf32>
      %125 = tpu.matmul %27, %124, %cst_54 {dimension_numbers = #tpu.dot_dimension_numbers<[1], [1], [0], [0], [0, 0, 1, 0], [], []>} : vector<8x8xbf16>, vector<8x8xbf16>, vector<8x8xf32> -> vector<8x8xf32>
      %cst_55 = arith.constant -1.000000e+30 : f32
      "tpu.trace_stop"() : () -> ()
      %126 = vector.broadcast %cst_55 : f32 to vector<8x8xf32>
      %127 = arith.select %79, %125, %126 : vector<8x8xi1>, vector<8x8xf32>
      %cst_56 = arith.constant dense<0xFF800000> : vector<8xf32>
      %128 = vector.multi_reduction <maximumf>, %127, %cst_56 [1] : vector<8x8xf32> to vector<8xf32>
      %129 = vector.shape_cast %128 : vector<8xf32> to vector<8x1xf32>
      %130 = arith.maximumf %arg20, %129 : vector<8x1xf32>
      %131 = arith.subf %arg20, %130 : vector<8x1xf32>
      %132 = math.exp %131 : vector<8x1xf32>
      %133 = vector.broadcast %130 : vector<8x1xf32> to vector<8x8xf32>
      %134 = arith.subf %127, %133 : vector<8x8xf32>
      %135 = math.exp %134 : vector<8x8xf32>
      %136 = arith.mulf %132, %arg21 : vector<8x1xf32>
      %cst_57 = arith.constant dense<0.000000e+00> : vector<8xf32>
      %137 = vector.multi_reduction <add>, %135, %cst_57 [1] : vector<8x8xf32> to vector<8xf32>
      %138 = vector.shape_cast %137 : vector<8xf32> to vector<8x1xf32>
      %139 = arith.addf %136, %138 : vector<8x1xf32>
      %140 = vector.broadcast %132 : vector<8x1xf32> to vector<8x8xf32>
      %141 = arith.mulf %140, %arg22 : vector<8x8xf32>
      %142 = arith.truncf %135 : vector<8x8xf32> to vector<8x8xbf16>
      %143 = vector.extract_strided_slice %76 {offsets = [0, 16], sizes = [8, 8], strides = [1, 1]} : vector<8x32xbf16> to vector<8x8xbf16>
      %cst_58 = arith.constant dense<0.000000e+00> : vector<8x8xf32>
      %144 = tpu.matmul %142, %143, %cst_58 {dimension_numbers = #tpu.dot_dimension_numbers<[1], [0], [0], [1], [0, 0, 1, 1], [], []>} : vector<8x8xbf16>, vector<8x8xbf16>, vector<8x8xf32> -> vector<8x8xf32>
      %145 = arith.addf %141, %144 : vector<8x8xf32>
      %146 = vector.extract_strided_slice %74 {offsets = [0, 24], sizes = [8, 8], strides = [1, 1]} : vector<8x32xbf16> to vector<8x8xbf16>
      "tpu.trace_start"() <{level = 10 : i32, message = "qd,kd->qk"}> : () -> ()
      %cst_59 = arith.constant dense<0.000000e+00> : vector<8x8xf32>
      %147 = tpu.matmul %28, %146, %cst_59 {dimension_numbers = #tpu.dot_dimension_numbers<[1], [1], [0], [0], [0, 0, 1, 0], [], []>} : vector<8x8xbf16>, vector<8x8xbf16>, vector<8x8xf32> -> vector<8x8xf32>
      %cst_60 = arith.constant -1.000000e+30 : f32
      "tpu.trace_stop"() : () -> ()
      %148 = vector.broadcast %cst_60 : f32 to vector<8x8xf32>
      %149 = arith.select %79, %147, %148 : vector<8x8xi1>, vector<8x8xf32>
      %cst_61 = arith.constant dense<0xFF800000> : vector<8xf32>
      %150 = vector.multi_reduction <maximumf>, %149, %cst_61 [1] : vector<8x8xf32> to vector<8xf32>
      %151 = vector.shape_cast %150 : vector<8xf32> to vector<8x1xf32>
      %152 = arith.maximumf %arg23, %151 : vector<8x1xf32>
      %153 = arith.subf %arg23, %152 : vector<8x1xf32>
      %154 = math.exp %153 : vector<8x1xf32>
      %155 = vector.broadcast %152 : vector<8x1xf32> to vector<8x8xf32>
      %156 = arith.subf %149, %155 : vector<8x8xf32>
      %157 = math.exp %156 : vector<8x8xf32>
      %158 = arith.mulf %154, %arg24 : vector<8x1xf32>
      %cst_62 = arith.constant dense<0.000000e+00> : vector<8xf32>
      %159 = vector.multi_reduction <add>, %157, %cst_62 [1] : vector<8x8xf32> to vector<8xf32>
      %160 = vector.shape_cast %159 : vector<8xf32> to vector<8x1xf32>
      %161 = arith.addf %158, %160 : vector<8x1xf32>
      %162 = vector.broadcast %154 : vector<8x1xf32> to vector<8x8xf32>
      %163 = arith.mulf %162, %arg25 : vector<8x8xf32>
      %164 = arith.truncf %157 : vector<8x8xf32> to vector<8x8xbf16>
      %165 = vector.extract_strided_slice %76 {offsets = [0, 24], sizes = [8, 8], strides = [1, 1]} : vector<8x32xbf16> to vector<8x8xbf16>
      %cst_63 = arith.constant dense<0.000000e+00> : vector<8x8xf32>
      %166 = tpu.matmul %164, %165, %cst_63 {dimension_numbers = #tpu.dot_dimension_numbers<[1], [0], [0], [1], [0, 0, 1, 1], [], []>} : vector<8x8xbf16>, vector<8x8xbf16>, vector<8x8xf32> -> vector<8x8xf32>
      %167 = arith.addf %163, %166 : vector<8x8xf32>
      scf.yield %86, %95, %101, %108, %117, %123, %130, %139, %145, %152, %161, %167 : vector<8x1xf32>, vector<8x1xf32>, vector<8x8xf32>, vector<8x1xf32>, vector<8x1xf32>, vector<8x8xf32>, vector<8x1xf32>, vector<8x1xf32>, vector<8x8xf32>, vector<8x1xf32>, vector<8x1xf32>, vector<8x8xf32>
    }
    %45 = tpu.reciprocal %44#1 {approx = true} : vector<8x1xf32> -> vector<8x1xf32>
    %46 = vector.broadcast %45 : vector<8x1xf32> to vector<8x8xf32>
    %47 = arith.mulf %44#2, %46 : vector<8x8xf32>
    %c0_26 = arith.constant 0 : index
    %c0_27 = arith.constant 0 : index
    %48 = vector.load %arg12[%c0_26, %c0_27] : memref<8x32xf32, #tpu.memory_space<vmem>>, vector<8x8xf32>
    tpu.vector_store %arg12[%c0_26, %c0_27], %47 {strides = array<i32>} : memref<8x32xf32, #tpu.memory_space<vmem>>, vector<8x8xf32>,
    %49 = tpu.reciprocal %44#4 {approx = true} : vector<8x1xf32> -> vector<8x1xf32>
    %50 = vector.broadcast %49 : vector<8x1xf32> to vector<8x8xf32>
    %51 = arith.mulf %44#5, %50 : vector<8x8xf32>
    %c0_28 = arith.constant 0 : index
    %c8 = arith.constant 8 : index
    %52 = vector.load %arg12[%c0_28, %c8] : memref<8x32xf32, #tpu.memory_space<vmem>>, vector<8x8xf32>
    tpu.vector_store %arg12[%c0_28, %c8], %51 {strides = array<i32>} : memref<8x32xf32, #tpu.memory_space<vmem>>, vector<8x8xf32>,
    %53 = tpu.reciprocal %44#7 {approx = true} : vector<8x1xf32> -> vector<8x1xf32>
    %54 = vector.broadcast %53 : vector<8x1xf32> to vector<8x8xf32>
    %55 = arith.mulf %44#8, %54 : vector<8x8xf32>
    %c0_29 = arith.constant 0 : index
    %c16 = arith.constant 16 : index
    %56 = vector.load %arg12[%c0_29, %c16] : memref<8x32xf32, #tpu.memory_space<vmem>>, vector<8x8xf32>
    tpu.vector_store %arg12[%c0_29, %c16], %55 {strides = array<i32>} : memref<8x32xf32, #tpu.memory_space<vmem>>, vector<8x8xf32>,
    %57 = tpu.reciprocal %44#10 {approx = true} : vector<8x1xf32> -> vector<8x1xf32>
    %58 = vector.broadcast %57 : vector<8x1xf32> to vector<8x8xf32>
    %59 = arith.mulf %44#11, %58 : vector<8x8xf32>
    %c0_30 = arith.constant 0 : index
    %c24 = arith.constant 24 : index
    %60 = vector.load %arg12[%c0_30, %c24] : memref<8x32xf32, #tpu.memory_space<vmem>>, vector<8x8xf32>
    tpu.vector_store %arg12[%c0_30, %c24], %59 {strides = array<i32>} : memref<8x32xf32, #tpu.memory_space<vmem>>, vector<8x8xf32>,
    %c0_31 = arith.constant 0 : index
    %c0_32 = arith.constant 0 : index
    %61 = vector.load %arg12[%c0_31, %c0_32] : memref<8x32xf32, #tpu.memory_space<vmem>>, vector<8x32xf32>
    %62 = arith.truncf %61 : vector<8x32xf32> to vector<8x32xbf16>
    %c0_33 = arith.constant 0 : index
    %c0_34 = arith.constant 0 : index
    %63 = vector.load %arg7[%c0_33, %c0_34] : memref<32x32xbf16, #tpu.memory_space<vmem>>, vector<32x32xbf16>
    %cst_35 = arith.constant dense<0.000000e+00> : vector<8x32xf32>
    %64 = tpu.matmul %62, %63, %cst_35 {dimension_numbers = #tpu.dot_dimension_numbers<[1], [0], [0], [1], [0, 0, 1, 1], [], []>} : vector<8x32xbf16>, vector<32x32xbf16>, vector<8x32xf32> -> vector<8x32xf32>
    %c0_36 = arith.constant 0 : index
    %c0_37 = arith.constant 0 : index
    %65 = vector.load %arg8[%c0_36, %c0_37] : memref<1x32xf32, #tpu.memory_space<vmem>>, vector<1x32xf32>
    %66 = vector.broadcast %65 : vector<1x32xf32> to vector<8x32xf32>
    %67 = arith.addf %64, %66 : vector<8x32xf32>
    %c0_38 = arith.constant 0 : index
    %c0_39 = arith.constant 0 : index
    %c0_40 = arith.constant 0 : index
    %68 = vector.load %arg9[%c0_38, %c0_39, %c0_40] : memref<1x8x32xf32, #tpu.memory_space<vmem>>, vector<1x8x32xf32>
    %69 = vector.shape_cast %68 : vector<1x8x32xf32> to vector<8x32xf32>
    %70 = vector.shape_cast %67 : vector<8x32xf32> to vector<1x8x32xf32>
    tpu.vector_store %arg9[%c0_38, %c0_39, %c0_40], %70 {strides = array<i32>} : memref<1x8x32xf32, #tpu.memory_space<vmem>>, vector<1x8x32xf32>,
    return
  }
  func.func @transform_0(%arg0: i32, %arg1: i32) -> (i32, i32, i32) {
    %c0_i32 = arith.constant 0 : i32
    %c0_i32_0 = arith.constant 0 : i32
    return %arg0, %arg1, %c0_i32 : i32, i32, i32
  }
  func.func @transform_1(%arg0: i32, %arg1: i32) -> (i32, i32) {
    %c0_i32 = arith.constant 0 : i32
    %c0_i32_0 = arith.constant 0 : i32
    %c0_i32_1 = arith.constant 0 : i32
    return %c0_i32, %c0_i32_0 : i32, i32
  }
  func.func @transform_2(%arg0: i32, %arg1: i32) -> (i32, i32) {
    %c0_i32 = arith.constant 0 : i32
    %c0_i32_0 = arith.constant 0 : i32
    %c0_i32_1 = arith.constant 0 : i32
    return %c0_i32, %c0_i32_0 : i32, i32
  }
  func.func @transform_3(%arg0: i32, %arg1: i32) -> (i32, i32) {
    %c0_i32 = arith.constant 0 : i32
    %c0_i32_0 = arith.constant 0 : i32
    %c0_i32_1 = arith.constant 0 : i32
    return %c0_i32, %c0_i32_0 : i32, i32
  }
  func.func @transform_4(%arg0: i32, %arg1: i32) -> (i32, i32) {
    %c0_i32 = arith.constant 0 : i32
    %c0_i32_0 = arith.constant 0 : i32
    %c0_i32_1 = arith.constant 0 : i32
    return %c0_i32, %c0_i32_0 : i32, i32
  }
  func.func @transform_5(%arg0: i32, %arg1: i32) -> (i32, i32) {
    %c0_i32 = arith.constant 0 : i32
    %c0_i32_0 = arith.constant 0 : i32
    %c0_i32_1 = arith.constant 0 : i32
    return %c0_i32, %c0_i32_0 : i32, i32
  }
  func.func @transform_6(%arg0: i32, %arg1: i32) -> (i32, i32) {
    %c0_i32 = arith.constant 0 : i32
    %c0_i32_0 = arith.constant 0 : i32
    %c0_i32_1 = arith.constant 0 : i32
    return %c0_i32, %c0_i32_0 : i32, i32
  }
  func.func @transform_7(%arg0: i32, %arg1: i32) -> (i32, i32, i32) {
    %c0_i32 = arith.constant 0 : i32
    %c0_i32_0 = arith.constant 0 : i32
    return %arg0, %arg1, %c0_i32 : i32, i32, i32
  }
}

</mosaic_0001>

<llo_original>
// kernel: tpu_custom_call.1
$region0: #{tpu_custom_call.1}
  #allocation0 [shape = 'u32[]', space=smem, size = 0x4, offset = 0x4, fixed_abs, tag = 'smem constant byte address 0x4 - core index']
  #allocation1 [shape = 'u32[144,128]{1,0:T(1,128)}', space=vmem, size = 0x12000, scoped, tag = 'internal scratch']
  #allocation2 [shape = 'bf16[8,32]{1,0:T(8,128)(2,1)}', space=vmem, size = 0x800, scoped, tag = 'scratch operand']
  #allocation3 [shape = 'bf16[8,32]{1,0:T(8,128)(2,1)}', space=vmem, size = 0x800, scoped, tag = 'scratch operand']
  #allocation4 [shape = 'f32[8,32]{1,0:T(8,128)}', space=vmem, size = 0x1000, scoped, tag = 'scratch operand']
  %s0 = inlined_call_operand.hbm [shape: f32[2,8,32], index: 0, kind: input, shape index: {}]
  %s1 = inlined_call_operand.hbm [shape: bf16[32,32], index: 1, kind: input, shape index: {}]
  %s2 = inlined_call_operand.vmem [shape: f32[1,32], index: 2, kind: input, shape index: {}]
  %s3 = inlined_call_operand.hbm [shape: bf16[32,32], index: 3, kind: input, shape index: {}]
  %s4 = inlined_call_operand.vmem [shape: f32[1,32], index: 4, kind: input, shape index: {}]
  %s5 = inlined_call_operand.hbm [shape: bf16[32,32], index: 5, kind: input, shape index: {}]
  %s6 = inlined_call_operand.vmem [shape: f32[1,32], index: 6, kind: input, shape index: {}]
  %s7 = inlined_call_operand.hbm [shape: f32[2,8,32], index: 7, kind: output, shape index: {}]
  %s8 = sld [smem:[#allocation0]]
  $region84: #{tpu_custom_call.1} parent=0
    _
  %s10 = ssub.s32 1, %s8
  %s11 = scalar_select 0, %s10, %s8
  $region1: #{tpu_custom_call.1} parent=0
    #allocation5 [shape = 'u8[8192]{0}', space=vmem, size = 0x2000, scoped, tag = 'input window, operand 0']
    #allocation6 [shape = 's32[2]{0}', space=sflag, size = 0x8, scoped, tag = 'scoped memory for tpu_custom_call.1']
    #allocation7 [shape = 's32[2]{0}', space=sflag, size = 0x8, scoped, tag = 'scoped memory for tpu_custom_call.1']
    #allocation8 [shape = 'u8[8192]{0}', space=vmem, size = 0x2000, scoped, tag = 'input window, operand 1, single buffered']
    #allocation9 [shape = 's32[1]{0}', space=sflag, size = 0x4, scoped, tag = 'scoped memory for tpu_custom_call.1']
    #allocation10 [shape = 'u8[8192]{0}', space=vmem, size = 0x2000, scoped, tag = 'input window, operand 3, single buffered']
    #allocation11 [shape = 'u8[8192]{0}', space=vmem, size = 0x2000, scoped, tag = 'input window, operand 5, single buffered']
    #allocation12 [shape = 's32[1]{0}', space=sflag, size = 0x4, scoped, tag = 'scoped memory for tpu_custom_call.1']
    #allocation13 [shape = 'u8[8192]{0}', space=vmem, size = 0x2000, scoped, tag = 'output window, operand 0']
    %12 = vsyncpa [#allocation6], 0
    %s13 = scalar_lea.sflag [#allocation6], 1
    %14 = vsyncpa %s13, 0
    %15 = vsyncpa [#allocation9], 0
    %16 = vsyncpa [#allocation12], 0
    %17 = vsyncpa [#allocation7], 0
    %s18 = scalar_lea.sflag [#allocation7], 1
    %19 = vsyncpa %s18, 0
    loop: start=0, step=1, limit=4
    $region2: #{tpu_custom_call.1} parent=1 // loop_pre_header
      _
    $region3: #{tpu_custom_call.1} parent=1 // loop_header
      %s21 = sphi 0, %s25
      %p22 = scmp.ge.s32.totalorder %s21, 4
      %s28 = sphi 0, %s40
      %s29 = sphi 0, %s36
      %s30 = sphi 0, %s28
      %s31 = sphi 0, %s29
      %s32 = sphi 0, %s30
      %s33 = sphi 0, %s31
      %s45 = sphi 0, %s47
      %s48 = sphi 0, %s45
      %s49 = sphi 0, %s48
      %s65 = sphi 0, %s49
      %s69 = sphi 0, %s69
      %s71 = sphi 0, %s69
      %s72 = sphi 0, %s71
      %s86 = sphi 0, %s72
      %s90 = sphi 0, %s90
      %s92 = sphi 0, %s90
      %s93 = sphi 0, %s92
      %s107 = sphi 0, %s93
      %s111 = sphi 0, %s111
      %s113 = sphi 0, %s111
      %s114 = sphi 0, %s113
      %s128 = sphi 0, %s114
      %s132 = sphi 0, %s132
      %s134 = sphi 0, %s132
      %s135 = sphi 0, %s134
      %s149 = sphi 0, %s135
      %s153 = sphi 0, %s153
      %s155 = sphi 0, %s153
      %s156 = sphi 0, %s155
      %s170 = sphi 0, %s156
      %s174 = sphi 0, %s174
      %s176 = sphi 0, %s174
      %s177 = sphi 0, %s176
      %s191 = sphi 0, %s177
      %s199 = sphi 0, %s201
      %s202 = sphi 0, %s199
      %s203 = sphi 0, %s202
      %s219 = sphi 0, %s203
    $region4: #{tpu_custom_call.1} parent=1 // loop_header_branch
      %24 = sbr.rel (%p22) target = $region8
    $region5: #{tpu_custom_call.1} parent=1 // loop_body
      %s26 = ssub.s32 %s21, 1
      %s27 = ssub.s32 %s21, 2
      %s34 = sadd.s32 1, %s29
      %p35 = scmp.ge.s32.totalorder %s34, 1
      %s36 = scalar_select %p35, 0, %s34
      %s37 = sadd.s32 1, %s28
      %s38 = scalar_select %p35, %s37, %s28
      %p39 = scmp.ge.s32.totalorder %s38, 2
      %s40 = scalar_select %p39, 0, %s38
      %s41 = ssub.s32 %s28, %s40
      %s42 = ssub.s32 %s29, %s36
      %s43 = sor.u32 %s41, %s42
      %p44 = scmp.eq.s32.totalorder %s43, 0
      %s46 = sadd.s32 %s45, 1
      %s47 = scalar_select %p44, %s45, %s46
      %p50 = pneg %p44
      %p51 = scmp.eq.s32.totalorder %s21, 1
      %p52 = por %p50, %p51
      %p53 = scmp.ne.s32.totalorder %s45, %s48
      %p54 = scmp.eq.s32.totalorder %s21, 0
      %p55 = por %p53, %p54
      %p56 = scmp.ne.s32.totalorder %s45, %s48
      %p57 = scmp.eq.s32.totalorder %s26, 1
      %p58 = por %p56, %p57
      %p59 = scmp.ne.s32.totalorder %s48, %s49
      %p60 = scmp.eq.s32.totalorder %s26, 0
      %p61 = por %p59, %p60
      %p62 = scmp.ne.s32.totalorder %s48, %s49
      %p63 = scmp.eq.s32.totalorder %s27, 1
      %p64 = por %p62, %p63
      %p66 = scmp.ne.s32.totalorder %s49, %s65
      %p67 = scmp.eq.s32.totalorder %s27, 0
      %p68 = por %p66, %p67
      %s70 = sadd.s32 %s69, 1
      %p73 = scmp.eq.s32.totalorder %s21, 1
      %p74 = scmp.ne.s32.totalorder %s69, %s71
      %p75 = scmp.eq.s32.totalorder %s21, 0
      %p76 = por %p74, %p75
      %p77 = scmp.ne.s32.totalorder %s69, %s71
      %p78 = scmp.eq.s32.totalorder %s26, 1
      %p79 = por %p77, %p78
      %p80 = scmp.ne.s32.totalorder %s71, %s72
      %p81 = scmp.eq.s32.totalorder %s26, 0
      %p82 = por %p80, %p81
      %p83 = scmp.ne.s32.totalorder %s71, %s72
      %p84 = scmp.eq.s32.totalorder %s27, 1
      %p85 = por %p83, %p84
      %p87 = scmp.ne.s32.totalorder %s72, %s86
      %p88 = scmp.eq.s32.totalorder %s27, 0
      %p89 = por %p87, %p88
      %s91 = sadd.s32 %s90, 1
      %p94 = scmp.eq.s32.totalorder %s21, 1
      %p95 = scmp.ne.s32.totalorder %s90, %s92
      %p96 = scmp.eq.s32.totalorder %s21, 0
      %p97 = por %p95, %p96
      %p98 = scmp.ne.s32.totalorder %s90, %s92
      %p99 = scmp.eq.s32.totalorder %s26, 1
      %p100 = por %p98, %p99
      %p101 = scmp.ne.s32.totalorder %s92, %s93
      %p102 = scmp.eq.s32.totalorder %s26, 0
      %p103 = por %p101, %p102
      %p104 = scmp.ne.s32.totalorder %s92, %s93
      %p105 = scmp.eq.s32.totalorder %s27, 1
      %p106 = por %p104, %p105
      %p108 = scmp.ne.s32.totalorder %s93, %s107
      %p109 = scmp.eq.s32.totalorder %s27, 0
      %p110 = por %p108, %p109
      %s112 = sadd.s32 %s111, 1
      %p115 = scmp.eq.s32.totalorder %s21, 1
      %p116 = scmp.ne.s32.totalorder %s111, %s113
      %p117 = scmp.eq.s32.totalorder %s21, 0
      %p118 = por %p116, %p117
      %p119 = scmp.ne.s32.totalorder %s111, %s113
      %p120 = scmp.eq.s32.totalorder %s26, 1
      %p121 = por %p119, %p120
      %p122 = scmp.ne.s32.totalorder %s113, %s114
      %p123 = scmp.eq.s32.totalorder %s26, 0
      %p124 = por %p122, %p123
      %p125 = scmp.ne.s32.totalorder %s113, %s114
      %p126 = scmp.eq.s32.totalorder %s27, 1
      %p127 = por %p125, %p126
      %p129 = scmp.ne.s32.totalorder %s114, %s128
      %p130 = scmp.eq.s32.totalorder %s27, 0
      %p131 = por %p129, %p130
      %s133 = sadd.s32 %s132, 1
      %p136 = scmp.eq.s32.totalorder %s21, 1
      %p137 = scmp.ne.s32.totalorder %s132, %s134
      %p138 = scmp.eq.s32.totalorder %s21, 0
      %p139 = por %p137, %p138
      %p140 = scmp.ne.s32.totalorder %s132, %s134
      %p141 = scmp.eq.s32.totalorder %s26, 1
      %p142 = por %p140, %p141
      %p143 = scmp.ne.s32.totalorder %s134, %s135
      %p144 = scmp.eq.s32.totalorder %s26, 0
      %p145 = por %p143, %p144
      %p146 = scmp.ne.s32.totalorder %s134, %s135
      %p147 = scmp.eq.s32.totalorder %s27, 1
      %p148 = por %p146, %p147
      %p150 = scmp.ne.s32.totalorder %s135, %s149
      %p151 = scmp.eq.s32.totalorder %s27, 0
      %p152 = por %p150, %p151
      %s154 = sadd.s32 %s153, 1
      %p157 = scmp.eq.s32.totalorder %s21, 1
      %p158 = scmp.ne.s32.totalorder %s153, %s155
      %p159 = scmp.eq.s32.totalorder %s21, 0
      %p160 = por %p158, %p159
      %p161 = scmp.ne.s32.totalorder %s153, %s155
      %p162 = scmp.eq.s32.totalorder %s26, 1
      %p163 = por %p161, %p162
      %p164 = scmp.ne.s32.totalorder %s155, %s156
      %p165 = scmp.eq.s32.totalorder %s26, 0
      %p166 = por %p164, %p165
      %p167 = scmp.ne.s32.totalorder %s155, %s156
      %p168 = scmp.eq.s32.totalorder %s27, 1
      %p169 = por %p167, %p168
      %p171 = scmp.ne.s32.totalorder %s156, %s170
      %p172 = scmp.eq.s32.totalorder %s27, 0
      %p173 = por %p171, %p172
      %s175 = sadd.s32 %s174, 1
      %p178 = scmp.eq.s32.totalorder %s21, 1
      %p179 = scmp.ne.s32.totalorder %s174, %s176
      %p180 = scmp.eq.s32.totalorder %s21, 0
      %p181 = por %p179, %p180
      %p182 = scmp.ne.s32.totalorder %s174, %s176
      %p183 = scmp.eq.s32.totalorder %s26, 1
      %p184 = por %p182, %p183
      %p185 = scmp.ne.s32.totalorder %s176, %s177
      %p186 = scmp.eq.s32.totalorder %s26, 0
      %p187 = por %p185, %p186
      %p188 = scmp.ne.s32.totalorder %s176, %s177
      %p189 = scmp.eq.s32.totalorder %s27, 1
      %p190 = por %p188, %p189
      %p192 = scmp.ne.s32.totalorder %s177, %s191
      %p193 = scmp.eq.s32.totalorder %s27, 0
      %p194 = por %p192, %p193
      %s195 = ssub.s32 %s28, %s40
      %s196 = ssub.s32 %s29, %s36
      %s197 = sor.u32 %s195, %s196
      %p198 = scmp.eq.s32.totalorder %s197, 0
      %s200 = sadd.s32 %s199, 1
      %s201 = scalar_select %p198, %s199, %s200
      %p204 = pneg %p198
      %p205 = scmp.eq.s32.totalorder %s21, 1
      %p206 = por %p204, %p205
      %p207 = scmp.ne.s32.totalorder %s199, %s202
      %p208 = scmp.eq.s32.totalorder %s21, 0
      %p209 = por %p207, %p208
      %p210 = scmp.ne.s32.totalorder %s199, %s202
      %p211 = scmp.eq.s32.totalorder %s26, 1
      %p212 = por %p210, %p211
      %p213 = scmp.ne.s32.totalorder %s202, %s203
      %p214 = scmp.eq.s32.totalorder %s26, 0
      %p215 = por %p213, %p214
      %p216 = scmp.ne.s32.totalorder %s202, %s203
      %p217 = scmp.eq.s32.totalorder %s27, 1
      %p218 = por %p216, %p217
      %p220 = scmp.ne.s32.totalorder %s203, %s219
      %p221 = scmp.eq.s32.totalorder %s27, 0
      %p222 = por %p220, %p221
      %p223 = scmp.le.s32.totalorder 1, %s21
      %p224 = scmp.lt.s32.totalorder %s21, 3
      %p225 = pnand %p223, %p224
      %p226 = pneg %p225
      // Predicated region
      $region9: #{tpu_custom_call.1} parent=5 // pred_check
        _
      $region10: #{tpu_custom_call.1} parent=5 // pred_check_branch
        %228 = sbr.rel (%p225) target = $region12
      $region11: #{tpu_custom_call.1} parent=5 // pred_region
        %s229 = ssub.s32 %s21, 1
        // Predicated region
        $region13: #{tpu_custom_call.1} parent=11 // pred_check
          %p230 = pneg %p82
        $region14: #{tpu_custom_call.1} parent=11 // pred_check_branch
          %232 = sbr.rel (%p230) target = $region16
        $region15: #{tpu_custom_call.1} parent=11 // pred_region
          %s234 = ssub.s32 256, 256
          %235 = vsyncadd [#allocation9], %s234
          %s236 = sshll.u32 [#allocation8], 4
          %s237 = int_to_ptr.vmem [resolvable:$true] %s236
          %242 = dma.hbm_to_vmem [thread:$0]  %s1, 256, %s237, [#allocation9], 64, 64, 4
        $region16: #{tpu_custom_call.1} parent=11 // pred_fallthru
          _
        // Predicated region
        $region17: #{tpu_custom_call.1} parent=11 // pred_check
          %p243 = pneg %p103
        $region18: #{tpu_custom_call.1} parent=11 // pred_check_branch
          %245 = sbr.rel (%p243) target = $region20
        $region19: #{tpu_custom_call.1} parent=11 // pred_region
          _
        $region20: #{tpu_custom_call.1} parent=11 // pred_fallthru
          _
        // Predicated region
        $region21: #{tpu_custom_call.1} parent=11 // pred_check
          %p246 = pneg %p124
        $region22: #{tpu_custom_call.1} parent=11 // pred_check_branch
          %248 = sbr.rel (%p246) target = $region24
        $region23: #{tpu_custom_call.1} parent=11 // pred_region
          %s250 = ssub.s32 256, 256
          %251 = vsyncadd [#allocation9], %s250
          %s252 = sshll.u32 [#allocation10], 4
          %s253 = int_to_ptr.vmem [resolvable:$true] %s252
          %258 = dma.hbm_to_vmem [thread:$0]  %s3, 256, %s253, [#allocation9], 64, 64, 4
        $region24: #{tpu_custom_call.1} parent=11 // pred_fallthru
          _
        // Predicated region
        $region25: #{tpu_custom_call.1} parent=11 // pred_check
          %p259 = pneg %p145
        $region26: #{tpu_custom_call.1} parent=11 // pred_check_branch
          %261 = sbr.rel (%p259) target = $region28
        $region27: #{tpu_custom_call.1} parent=11 // pred_region
          _
        $region28: #{tpu_custom_call.1} parent=11 // pred_fallthru
          _
        // Predicated region
        $region29: #{tpu_custom_call.1} parent=11 // pred_check
          %p262 = pneg %p166
        $region30: #{tpu_custom_call.1} parent=11 // pred_check_branch
          %264 = sbr.rel (%p262) target = $region32
        $region31: #{tpu_custom_call.1} parent=11 // pred_region
          %s266 = ssub.s32 256, 256
          %267 = vsyncadd [#allocation12], %s266
          %s268 = sshll.u32 [#allocation11], 4
          %s269 = int_to_ptr.vmem [resolvable:$true] %s268
          %274 = dma.hbm_to_vmem [thread:$0]  %s5, 256, %s269, [#allocation12], 64, 64, 4
        $region32: #{tpu_custom_call.1} parent=11 // pred_fallthru
          _
        // Predicated region
        $region33: #{tpu_custom_call.1} parent=11 // pred_check
          %p275 = pneg %p187
        $region34: #{tpu_custom_call.1} parent=11 // pred_check_branch
          %277 = sbr.rel (%p275) target = $region36
        $region35: #{tpu_custom_call.1} parent=11 // pred_region
          _
        $region36: #{tpu_custom_call.1} parent=11 // pred_fallthru
          _
      $region12: #{tpu_custom_call.1} parent=5 // pred_fallthru
        _
      %p278 = scmp.lt.s32.totalorder %s21, 2
      // Predicated region
      $region37: #{tpu_custom_call.1} parent=5 // pred_check
        %p279 = pneg %p278
      $region38: #{tpu_custom_call.1} parent=5 // pred_check_branch
        %281 = sbr.rel (%p279) target = $region40
      $region39: #{tpu_custom_call.1} parent=5 // pred_region
        // Predicated region
        $region41: #{tpu_custom_call.1} parent=39 // pred_check
          %p282 = pneg %p55
        $region42: #{tpu_custom_call.1} parent=39 // pred_check_branch
          %284 = sbr.rel (%p282) target = $region44
        $region43: #{tpu_custom_call.1} parent=39 // pred_region
          %s285 = sand.u32 %s45, 1
          %s286 = scalar_lea.sflag [#allocation6], %s285
          %s287 = sand.u32 %s45, 1
          %s288 = smul.addr %s287, 8
          %s289 = scalar_lea.vmem [#allocation5], %s288
          %s291 = ssub.s32 128, 128
          %292 = vsyncadd %s286, %s291
          %s293 = sadd.s32 %s29, %s28
          %s294 = smul.addr %s293, 128
          %s295 = scalar_lea.hbm %s0, %s294
          %s297 = sshll.u32 %s289, 4
          %s298 = int_to_ptr.vmem [resolvable:$true] %s297
          %300 = dma.hbm_to_vmem [thread:$0]  %s295, 128, %s298, %s286
        $region44: #{tpu_custom_call.1} parent=39 // pred_fallthru
          _
      $region40: #{tpu_custom_call.1} parent=5 // pred_fallthru
        _
      %p301 = scmp.le.s32.totalorder 1, %s21
      %p302 = scmp.lt.s32.totalorder %s21, 3
      %p303 = pnand %p301, %p302
      %p304 = pneg %p303
      // Predicated region
      $region45: #{tpu_custom_call.1} parent=5 // pred_check
        _
      $region46: #{tpu_custom_call.1} parent=5 // pred_check_branch
        %306 = sbr.rel (%p303) target = $region48
      $region47: #{tpu_custom_call.1} parent=5 // pred_region
        %s307 = ssub.s32 %s21, 1
        %s308 = sand.u32 %s48, 1
        %s309 = scalar_lea.sflag [#allocation6], %s308
        %s310 = sand.u32 %s48, 1
        %s311 = smul.addr %s310, 8
        %s312 = scalar_lea.vmem [#allocation5], %s311
        // Predicated region
        $region49: #{tpu_custom_call.1} parent=47 // pred_check
          %p313 = pneg %p61
        $region50: #{tpu_custom_call.1} parent=47 // pred_check_branch
          %315 = sbr.rel (%p313) target = $region52
        $region51: #{tpu_custom_call.1} parent=47 // pred_region
          %316 = dma.done %s309, 128
        $region52: #{tpu_custom_call.1} parent=47 // pred_fallthru
          _
        // Predicated region
        $region53: #{tpu_custom_call.1} parent=47 // pred_check
          %p317 = pneg %p82
        $region54: #{tpu_custom_call.1} parent=47 // pred_check_branch
          %319 = sbr.rel (%p317) target = $region56
        $region55: #{tpu_custom_call.1} parent=47 // pred_region
          %320 = dma.done [#allocation9], 256
        $region56: #{tpu_custom_call.1} parent=47 // pred_fallthru
          _
        // Predicated region
        $region57: #{tpu_custom_call.1} parent=47 // pred_check
          %p321 = pneg %p124
        $region58: #{tpu_custom_call.1} parent=47 // pred_check_branch
          %323 = sbr.rel (%p321) target = $region60
        $region59: #{tpu_custom_call.1} parent=47 // pred_region
          %324 = dma.done [#allocation9], 256
        $region60: #{tpu_custom_call.1} parent=47 // pred_fallthru
          _
        // Predicated region
        $region61: #{tpu_custom_call.1} parent=47 // pred_check
          %p325 = pneg %p166
        $region62: #{tpu_custom_call.1} parent=47 // pred_check_branch
          %327 = sbr.rel (%p325) target = $region64
        $region63: #{tpu_custom_call.1} parent=47 // pred_region
          %328 = dma.done [#allocation12], 256
        $region64: #{tpu_custom_call.1} parent=47 // pred_fallthru
          _
        %s329 = sand.u32 %s48, 1
        %s330 = scalar_lea.sflag [#allocation6], %s329
        %s331 = sand.u32 %s48, 1
        %s332 = smul.addr %s331, 8
        %s333 = scalar_lea.vmem [#allocation5], %s332
        %p334 = pneg %p61
        %p335 = pneg %p58
        %p336 = pneg %p82
        %p337 = pneg %p79
        %p338 = pneg %p103
        %p339 = pneg %p100
        %p340 = pneg %p124
        %p341 = pneg %p121
        %p342 = pneg %p145
        %p343 = pneg %p142
        %p344 = pneg %p166
        %p345 = pneg %p163
        %p346 = pneg %p187
        %p347 = pneg %p184
        %p348 = pneg %p215
        %p349 = pneg %p212
        %s350 = sand.u32 %s202, 1
        %s351 = scalar_lea.sflag [#allocation7], %s350
        %s352 = sand.u32 %s202, 1
        %s353 = smul.addr %s352, 8
        %s354 = scalar_lea.vmem [#allocation13], %s353
        %v356 = vld [vmem:[%s312] sm:$0xff]
        %v357 = vpack.c.bf16 %v356, %v356
        %v358 = vld [vmem:[#allocation8] sm:$0xf]
        %v359 = vld [vmem:[#allocation8 + $0x4] sm:$0xf]
        %v360 = vld [vmem:[#allocation8 + $0x8] sm:$0xf]
        %v361 = vld [vmem:[#allocation8 + $0xc] sm:$0xf]
        %v362 = vld [vmem:[%s2] sm:$0x1]
        %v364 = vlaneseq
        %v365 = vshrl.u32 %v364, 7
        %v366 = vsub.s32 0, %v365
        %v367 = vrot.slane %v362, %v366
        %v373 = vunpack.c.l.b16 %v358
        %v374 = vunpack.c.l.b16 %v359
        %v375 = vunpack.c.l.b16 %v360
        %v376 = vunpack.c.l.b16 %v361
        %v377 = vpack.c.b16 %v374, %v373
        %v378 = vpack.c.b16 %v376, %v375
        %vm381 = vcmask 261120
        %v383 = vsel %vm381, %v357, 0
        %385 = vmatprep.subr.bf16.mxu0 0
        %386 = vmatpush1.bf16.msra.mxu0 0
        %387 = vmatprep.subr.bf16.mxu0 0
        %388 = vmatpush1.bf16.msra.mxu0 0
        %389 = vmatprep.subr.bf16.mxu0 0
        %390 = vmatpush1.bf16.msra.mxu0 0
        %391 = vmatprep.subr.bf16.mxu0 0
        %392 = vmatpush1.bf16.msra.mxu0 0
        %393 = vmatprep.subr.bf16.mxu0 0
        %394 = vmatpush1.bf16.msra.mxu0 0
        %395 = vmatprep.subr.bf16.mxu0 0
        %396 = vmatpush1.bf16.msra.mxu0 0
        %397 = vmatprep.subr.bf16.mxu0 0
        %398 = vmatpush1.bf16.msra.mxu0 %v378
        %399 = vmatprep.subr.bf16.mxu0 0
        %400 = vmatpush1.bf16.msra.mxu0 %v377
        %401 = vmatprep.subr.bf16.mxu0 0
        %402 = vmatpush2.bf16.msra.mxu0 0
        %403 = vmatprep.subr.bf16.mxu0 0
        %404 = vmatpush2.bf16.msra.mxu0 0
        %405 = vmatprep.subr.bf16.mxu0 0
        %406 = vmatpush2.bf16.msra.mxu0 0
        %407 = vmatprep.subr.bf16.mxu0 0
        %408 = vmatpush2.bf16.msra.mxu0 0
        %409 = vmatprep.subr.bf16.mxu0 0
        %410 = vmatpush2.bf16.msra.mxu0 0
        %411 = vmatprep.subr.bf16.mxu0 0
        %412 = vmatpush2.bf16.msra.mxu0 0
        %413 = vmatprep.subr.bf16.mxu0 0
        %414 = vmatpush2.bf16.msra.mxu0 0
        %415 = vmatprep.subr.bf16.mxu0 0
        %416 = vmatpush2.bf16.msra.mxu0 0
        %417 = vmatprep.mubr.bf16.mxu0 0
        %418 = vmatmul.mubr.bf16.gmra.mxu0 %v383
        %v419 = vpop.f32.mrf.mxu0
        %v420 = vadd.f32 %v367, %v419
        %v421 = vpop.f32.mrf.mxu0
        %v422 = vpop.f32.mrf.mxu0
        %v423 = vpop.f32.mrf.mxu0
        %424 = vdwg.mxu0
        %v425 = vpack.c.bf16 %v420, %v420
        %v426 = vld [vmem:[#allocation10] sm:$0xf]
        %v427 = vld [vmem:[#allocation10 + $0x4] sm:$0xf]
        %v428 = vld [vmem:[#allocation10 + $0x8] sm:$0xf]
        %v429 = vld [vmem:[#allocation10 + $0xc] sm:$0xf]
        %v430 = vld [vmem:[%s4] sm:$0x1]
        %v432 = vlaneseq
        %v433 = vshrl.u32 %v432, 7
        %v434 = vsub.s32 0, %v433
        %v435 = vrot.slane %v430, %v434
        %v441 = vunpack.c.l.b16 %v426
        %v442 = vunpack.c.l.b16 %v427
        %v443 = vunpack.c.l.b16 %v428
        %v444 = vunpack.c.l.b16 %v429
        %v445 = vpack.c.b16 %v442, %v441
        %v446 = vpack.c.b16 %v444, %v443
        %449 = vmatprep.subr.bf16.mxu0 0
        %450 = vmatpush1.bf16.msra.mxu0 0
        %451 = vmatprep.subr.bf16.mxu0 0
        %452 = vmatpush1.bf16.msra.mxu0 0
        %453 = vmatprep.subr.bf16.mxu0 0
        %454 = vmatpush1.bf16.msra.mxu0 0
        %455 = vmatprep.subr.bf16.mxu0 0
        %456 = vmatpush1.bf16.msra.mxu0 0
        %457 = vmatprep.subr.bf16.mxu0 0
        %458 = vmatpush1.bf16.msra.mxu0 0
        %459 = vmatprep.subr.bf16.mxu0 0
        %460 = vmatpush1.bf16.msra.mxu0 0
        %461 = vmatprep.subr.bf16.mxu0 0
        %462 = vmatpush1.bf16.msra.mxu0 %v446
        %463 = vmatprep.subr.bf16.mxu0 0
        %464 = vmatpush1.bf16.msra.mxu0 %v445
        %465 = vmatprep.subr.bf16.mxu0 0
        %466 = vmatpush2.bf16.msra.mxu0 0
        %467 = vmatprep.subr.bf16.mxu0 0
        %468 = vmatpush2.bf16.msra.mxu0 0
        %469 = vmatprep.subr.bf16.mxu0 0
        %470 = vmatpush2.bf16.msra.mxu0 0
        %471 = vmatprep.subr.bf16.mxu0 0
        %472 = vmatpush2.bf16.msra.mxu0 0
        %473 = vmatprep.subr.bf16.mxu0 0
        %474 = vmatpush2.bf16.msra.mxu0 0
        %475 = vmatprep.subr.bf16.mxu0 0
        %476 = vmatpush2.bf16.msra.mxu0 0
        %477 = vmatprep.subr.bf16.mxu0 0
        %478 = vmatpush2.bf16.msra.mxu0 0
        %479 = vmatprep.subr.bf16.mxu0 0
        %480 = vmatpush2.bf16.msra.mxu0 0
        %481 = vmatprep.mubr.bf16.mxu0 0
        %482 = vmatmul.mubr.bf16.gmra.mxu0 %v383
        %v483 = vpop.f32.mrf.mxu0
        %v484 = vadd.f32 %v435, %v483
        %v485 = vpop.f32.mrf.mxu0
        %v486 = vpop.f32.mrf.mxu0
        %v487 = vpop.f32.mrf.mxu0
        %488 = vdwg.mxu0
        %v489 = vpack.c.bf16 %v484, %v484
        %s490 = smul.u32 %s31, 8
        %s491 = sshra.s32 %s490, 3
        %s492 = sand.u32 %s490, 7
        %s493 = smul.addr %s491, 4
        %s494 = scalar_lea.vmem [#allocation2], %s493
        %vm495 = vcmask 257024
        %496 = vst.msk [vmem:[%s494] sm:$0xf] %vm495, %v425
        %s497 = smul.addr %s491, 4
        %s498 = scalar_lea.vmem [#allocation3], %s497
        %499 = vst.msk [vmem:[%s498] sm:$0xf] %vm495, %v489
        %v500 = vlaneseq
        %v501 = vshrl.u32 %v500, 7
        %v502 = vstv %s490
        %v503 = vadd.s32 %v502, %v501
        %v504 = vlaneseq
        %v505 = vand.u32 %v504, 127
        %s506 = sadd.s32 %s31, 1
        // While loop
        $region65: #{tpu_custom_call.1} parent=47 // loop_pre_header
          _
        $region66: #{tpu_custom_call.1} parent=47 // loop_header
          %s508 = sphi 0, %s510
          %p509 = scmp.ge.s32.totalorder %s508, %s506
          %v513 = vphi -1e+30, %v588
          %v514 = vphi 0.0, %v599
          %v515 = vphi 0.0, %v649
          %v516 = vphi -1e+30, %v708
          %v517 = vphi 0.0, %v719
          %v518 = vphi 0.0, %v773
          %v519 = vphi -1e+30, %v828
          %v520 = vphi 0.0, %v839
          %v521 = vphi 0.0, %v890
          %v522 = vphi -1e+30, %v945
          %v523 = vphi 0.0, %v956
          %v524 = vphi 0.0, %v1007
        $region67: #{tpu_custom_call.1} parent=47 // loop_header_branch
          %512 = sbr.rel (%p509) target = $region71
        $region68: #{tpu_custom_call.1} parent=47 // loop_body
          %s525 = smul.u32 %s508, 8
          %s526 = sshra.s32 %s525, 3
          %s527 = sand.u32 %s525, 7
          %s528 = smul.addr %s526, 4
          %s529 = scalar_lea.vmem [#allocation3], %s528
          %v530 = vld [vmem:[%s529] sm:$0xf]
          %s531 = smul.addr %s526, 4
          %s532 = scalar_lea.vmem [#allocation2], %s531
          %v533 = vld [vmem:[%s532] sm:$0xf]
          %v534 = vstv %s525
          %v535 = vadd.s32 %v534, %v505
          %vm536 = vcmp.ge.s32.totalorder %v503, %v535
          %vm537 = vcmask 64512
          %v539 = vsel %vm537, %v425, 0
          %v542 = vsel %vm537, %v530, 0
          %544 = vmatprep.subr.bf16.mxu0 0
          %545 = vmatpush1.bf16.xpose.msra.mxu0 0
          %546 = vmatprep.subr.bf16.mxu0 0
          %547 = vmatpush1.bf16.xpose.msra.mxu0 0
          %548 = vmatprep.subr.bf16.mxu0 0
          %549 = vmatpush1.bf16.xpose.msra.mxu0 0
          %550 = vmatprep.subr.bf16.mxu0 0
          %551 = vmatpush1.bf16.xpose.msra.mxu0 0
          %552 = vmatprep.subr.bf16.mxu0 0
          %553 = vmatpush1.bf16.xpose.msra.mxu0 0
          %554 = vmatprep.subr.bf16.mxu0 0
          %555 = vmatpush1.bf16.xpose.msra.mxu0 0
          %556 = vmatprep.subr.bf16.mxu0 0
          %557 = vmatpush1.bf16.xpose.msra.mxu0 0
          %558 = vmatprep.subr.bf16.mxu0 0
          %559 = vmatpush1.bf16.xpose.msra.mxu0 %v542
          %560 = vmatprep.subr.bf16.mxu0 0
          %561 = vmatpush2.bf16.xpose.msra.mxu0 0
          %562 = vmatprep.subr.bf16.mxu0 0
          %563 = vmatpush2.bf16.xpose.msra.mxu0 0
          %564 = vmatprep.subr.bf16.mxu0 0
          %565 = vmatpush2.bf16.xpose.msra.mxu0 0
          %566 = vmatprep.subr.bf16.mxu0 0
          %567 = vmatpush2.bf16.xpose.msra.mxu0 0
          %568 = vmatprep.subr.bf16.mxu0 0
          %569 = vmatpush2.bf16.xpose.msra.mxu0 0
          %570 = vmatprep.subr.bf16.mxu0 0
          %571 = vmatpush2.bf16.xpose.msra.mxu0 0
          %572 = vmatprep.subr.bf16.mxu0 0
          %573 = vmatpush2.bf16.xpose.msra.mxu0 0
          %574 = vmatprep.subr.bf16.mxu0 0
          %575 = vmatpush2.bf16.xpose.msra.mxu0 0
          %576 = vmatprep.mubr.bf16.mxu0 0
          %577 = vmatmul.mubr.bf16.gmra.mxu0 %v539
          %v578 = vpop.f32.mrf.mxu0
          %v579 = vadd.f32 0.0, %v578
          %v580 = vpop.f32.mrf.mxu0
          %v581 = vpop.f32.mrf.mxu0
          %v582 = vpop.f32.mrf.mxu0
          %583 = vdwg.mxu0
          %v584 = vsel %vm536, %v579, -1e+30
          %v585 = vsel %vm537, %v584, -inf
          %586 = vmax.xlane.f32.xlu0 %v585
          %v587 = vpop.xlane.xlu0 %586
          %v588 = vmax.f32 %v513, %v587
          %v589 = vsub.f32 %v513, %v588
          %v590 = vmul.f32 %v589, 1.442695
          %v591 = vpow.pop %v590
          %v592 = vsub.f32 %v584, %v588
          %v593 = vmul.f32 %v592, 1.442695
          %v594 = vpow.pop %v593
          %v595 = vmul.f32 %v591, %v514
          %v596 = vsel %vm537, %v594, 0.0
          %597 = vadd.xlane.f32.xlu0 %v596
          %v598 = vpop.xlane.xlu0 %597
          %v599 = vadd.f32 %v595, %v598
          %v600 = vmul.f32 %v591, %v515
          %v601 = vpack.c.bf16 %v594, %v594
          %v603 = vsel %vm537, %v601, 0
          %vm605 = vcmask 1043456
          %v607 = vsel %vm605, %v533, 0
          %609 = vmatprep.subr.bf16.mxu0 0
          %610 = vmatpush1.bf16.msra.mxu0 0
          %611 = vmatprep.subr.bf16.mxu0 0
          %612 = vmatpush1.bf16.msra.mxu0 0
          %613 = vmatprep.subr.bf16.mxu0 0
          %614 = vmatpush1.bf16.msra.mxu0 0
          %615 = vmatprep.subr.bf16.mxu0 0
          %616 = vmatpush1.bf16.msra.mxu0 0
          %617 = vmatprep.subr.bf16.mxu0 0
          %618 = vmatpush1.bf16.msra.mxu0 0
          %619 = vmatprep.subr.bf16.mxu0 0
          %620 = vmatpush1.bf16.msra.mxu0 0
          %621 = vmatprep.subr.bf16.mxu0 0
          %622 = vmatpush1.bf16.msra.mxu0 0
          %623 = vmatprep.subr.bf16.mxu0 0
          %624 = vmatpush1.bf16.msra.mxu0 %v607
          %625 = vmatprep.subr.bf16.mxu0 0
          %626 = vmatpush2.bf16.msra.mxu0 0
          %627 = vmatprep.subr.bf16.mxu0 0
          %628 = vmatpush2.bf16.msra.mxu0 0
          %629 = vmatprep.subr.bf16.mxu0 0
          %630 = vmatpush2.bf16.msra.mxu0 0
          %631 = vmatprep.subr.bf16.mxu0 0
          %632 = vmatpush2.bf16.msra.mxu0 0
          %633 = vmatprep.subr.bf16.mxu0 0
          %634 = vmatpush2.bf16.msra.mxu0 0
          %635 = vmatprep.subr.bf16.mxu0 0
          %636 = vmatpush2.bf16.msra.mxu0 0
          %637 = vmatprep.subr.bf16.mxu0 0
          %638 = vmatpush2.bf16.msra.mxu0 0
          %639 = vmatprep.subr.bf16.mxu0 0
          %640 = vmatpush2.bf16.msra.mxu0 0
          %641 = vmatprep.mubr.bf16.mxu0 0
          %642 = vmatmul.mubr.bf16.gmra.mxu0 %v603
          %v643 = vpop.f32.mrf.mxu0
          %v644 = vadd.f32 0.0, %v643
          %v645 = vpop.f32.mrf.mxu0
          %v646 = vpop.f32.mrf.mxu0
          %v647 = vpop.f32.mrf.mxu0
          %648 = vdwg.mxu0
          %v649 = vadd.f32 %v600, %v644
          %651 = vrot.lane.b32.xlu0 %v425, 120
          %v652 = vpop.permute.xlu0 %651
          %v654 = vunpack.c.l.b16 %v530
          %v655 = vpack.c.b16 %v654, %v654
          %656 = vrot.lane.b32.xlu0 %v655, 120
          %v657 = vpop.permute.xlu0 %656
          %v659 = vsel %vm537, %v652, 0
          %v662 = vsel %vm537, %v657, 0
          %664 = vmatprep.subr.bf16.mxu0 0
          %665 = vmatpush1.bf16.xpose.msra.mxu0 0
          %666 = vmatprep.subr.bf16.mxu0 0
          %667 = vmatpush1.bf16.xpose.msra.mxu0 0
          %668 = vmatprep.subr.bf16.mxu0 0
          %669 = vmatpush1.bf16.xpose.msra.mxu0 0
          %670 = vmatprep.subr.bf16.mxu0 0
          %671 = vmatpush1.bf16.xpose.msra.mxu0 0
          %672 = vmatprep.subr.bf16.mxu0 0
          %673 = vmatpush1.bf16.xpose.msra.mxu0 0
          %674 = vmatprep.subr.bf16.mxu0 0
          %675 = vmatpush1.bf16.xpose.msra.mxu0 0
          %676 = vmatprep.subr.bf16.mxu0 0
          %677 = vmatpush1.bf16.xpose.msra.mxu0 0
          %678 = vmatprep.subr.bf16.mxu0 0
          %679 = vmatpush1.bf16.xpose.msra.mxu0 %v662
          %680 = vmatprep.subr.bf16.mxu0 0
          %681 = vmatpush2.bf16.xpose.msra.mxu0 0
          %682 = vmatprep.subr.bf16.mxu0 0
          %683 = vmatpush2.bf16.xpose.msra.mxu0 0
          %684 = vmatprep.subr.bf16.mxu0 0
          %685 = vmatpush2.bf16.xpose.msra.mxu0 0
          %686 = vmatprep.subr.bf16.mxu0 0
          %687 = vmatpush2.bf16.xpose.msra.mxu0 0
          %688 = vmatprep.subr.bf16.mxu0 0
          %689 = vmatpush2.bf16.xpose.msra.mxu0 0
          %690 = vmatprep.subr.bf16.mxu0 0
          %691 = vmatpush2.bf16.xpose.msra.mxu0 0
          %692 = vmatprep.subr.bf16.mxu0 0
          %693 = vmatpush2.bf16.xpose.msra.mxu0 0
          %694 = vmatprep.subr.bf16.mxu0 0
          %695 = vmatpush2.bf16.xpose.msra.mxu0 0
          %696 = vmatprep.mubr.bf16.mxu0 0
          %697 = vmatmul.mubr.bf16.gmra.mxu0 %v659
          %v698 = vpop.f32.mrf.mxu0
          %v699 = vadd.f32 0.0, %v698
          %v700 = vpop.f32.mrf.mxu0
          %v701 = vpop.f32.mrf.mxu0
          %v702 = vpop.f32.mrf.mxu0
          %703 = vdwg.mxu0
          %v704 = vsel %vm536, %v699, -1e+30
          %v705 = vsel %vm537, %v704, -inf
          %706 = vmax.xlane.f32.xlu0 %v705
          %v707 = vpop.xlane.xlu0 %706
          %v708 = vmax.f32 %v516, %v707
          %v709 = vsub.f32 %v516, %v708
          %v710 = vmul.f32 %v709, 1.442695
          %v711 = vpow.pop %v710
          %v712 = vsub.f32 %v704, %v708
          %v713 = vmul.f32 %v712, 1.442695
          %v714 = vpow.pop %v713
          %v715 = vmul.f32 %v711, %v517
          %v716 = vsel %vm537, %v714, 0.0
          %717 = vadd.xlane.f32.xlu0 %v716
          %v718 = vpop.xlane.xlu0 %717
          %v719 = vadd.f32 %v715, %v718
          %v720 = vmul.f32 %v711, %v518
          %v721 = vpack.c.bf16 %v714, %v714
          %v723 = vunpack.c.l.b16 %v533
          %v724 = vpack.c.b16 %v723, %v723
          %725 = vrot.lane.b32.xlu0 %v724, 120
          %v726 = vpop.permute.xlu0 %725
          %v728 = vsel %vm537, %v721, 0
          %v731 = vsel %vm605, %v726, 0
          %733 = vmatprep.subr.bf16.mxu0 0
          %734 = vmatpush1.bf16.msra.mxu0 0
          %735 = vmatprep.subr.bf16.mxu0 0
          %736 = vmatpush1.bf16.msra.mxu0 0
          %737 = vmatprep.subr.bf16.mxu0 0
          %738 = vmatpush1.bf16.msra.mxu0 0
          %739 = vmatprep.subr.bf16.mxu0 0
          %740 = vmatpush1.bf16.msra.mxu0 0
          %741 = vmatprep.subr.bf16.mxu0 0
          %742 = vmatpush1.bf16.msra.mxu0 0
          %743 = vmatprep.subr.bf16.mxu0 0
          %744 = vmatpush1.bf16.msra.mxu0 0
          %745 = vmatprep.subr.bf16.mxu0 0
          %746 = vmatpush1.bf16.msra.mxu0 0
          %747 = vmatprep.subr.bf16.mxu0 0
          %748 = vmatpush1.bf16.msra.mxu0 %v731
          %749 = vmatprep.subr.bf16.mxu0 0
          %750 = vmatpush2.bf16.msra.mxu0 0
          %751 = vmatprep.subr.bf16.mxu0 0
          %752 = vmatpush2.bf16.msra.mxu0 0
          %753 = vmatprep.subr.bf16.mxu0 0
          %754 = vmatpush2.bf16.msra.mxu0 0
          %755 = vmatprep.subr.bf16.mxu0 0
          %756 = vmatpush2.bf16.msra.mxu0 0
          %757 = vmatprep.subr.bf16.mxu0 0
          %758 = vmatpush2.bf16.msra.mxu0 0
          %759 = vmatprep.subr.bf16.mxu0 0
          %760 = vmatpush2.bf16.msra.mxu0 0
          %761 = vmatprep.subr.bf16.mxu0 0
          %762 = vmatpush2.bf16.msra.mxu0 0
          %763 = vmatprep.subr.bf16.mxu0 0
          %764 = vmatpush2.bf16.msra.mxu0 0
          %765 = vmatprep.mubr.bf16.mxu0 0
          %766 = vmatmul.mubr.bf16.gmra.mxu0 %v728
          %v767 = vpop.f32.mrf.mxu0
          %v768 = vadd.f32 0.0, %v767
          %v769 = vpop.f32.mrf.mxu0
          %v770 = vpop.f32.mrf.mxu0
          %v771 = vpop.f32.mrf.mxu0
          %772 = vdwg.mxu0
          %v773 = vadd.f32 %v720, %v768
          %774 = vrot.lane.b32.xlu0 %v425, 112
          %v775 = vpop.permute.xlu0 %774
          %776 = vrot.lane.b32.xlu0 %v655, 112
          %v777 = vpop.permute.xlu0 %776
          %v779 = vsel %vm537, %v775, 0
          %v782 = vsel %vm537, %v777, 0
          %784 = vmatprep.subr.bf16.mxu0 0
          %785 = vmatpush1.bf16.xpose.msra.mxu0 0
          %786 = vmatprep.subr.bf16.mxu0 0
          %787 = vmatpush1.bf16.xpose.msra.mxu0 0
          %788 = vmatprep.subr.bf16.mxu0 0
          %789 = vmatpush1.bf16.xpose.msra.mxu0 0
          %790 = vmatprep.subr.bf16.mxu0 0
          %791 = vmatpush1.bf16.xpose.msra.mxu0 0
          %792 = vmatprep.subr.bf16.mxu0 0
          %793 = vmatpush1.bf16.xpose.msra.mxu0 0
          %794 = vmatprep.subr.bf16.mxu0 0
          %795 = vmatpush1.bf16.xpose.msra.mxu0 0
          %796 = vmatprep.subr.bf16.mxu0 0
          %797 = vmatpush1.bf16.xpose.msra.mxu0 0
          %798 = vmatprep.subr.bf16.mxu0 0
          %799 = vmatpush1.bf16.xpose.msra.mxu0 %v782
          %800 = vmatprep.subr.bf16.mxu0 0
          %801 = vmatpush2.bf16.xpose.msra.mxu0 0
          %802 = vmatprep.subr.bf16.mxu0 0
          %803 = vmatpush2.bf16.xpose.msra.mxu0 0
          %804 = vmatprep.subr.bf16.mxu0 0
          %805 = vmatpush2.bf16.xpose.msra.mxu0 0
          %806 = vmatprep.subr.bf16.mxu0 0
          %807 = vmatpush2.bf16.xpose.msra.mxu0 0
          %808 = vmatprep.subr.bf16.mxu0 0
          %809 = vmatpush2.bf16.xpose.msra.mxu0 0
          %810 = vmatprep.subr.bf16.mxu0 0
          %811 = vmatpush2.bf16.xpose.msra.mxu0 0
          %812 = vmatprep.subr.bf16.mxu0 0
          %813 = vmatpush2.bf16.xpose.msra.mxu0 0
          %814 = vmatprep.subr.bf16.mxu0 0
          %815 = vmatpush2.bf16.xpose.msra.mxu0 0
          %816 = vmatprep.mubr.bf16.mxu0 0
          %817 = vmatmul.mubr.bf16.gmra.mxu0 %v779
          %v818 = vpop.f32.mrf.mxu0
          %v819 = vadd.f32 0.0, %v818
          %v820 = vpop.f32.mrf.mxu0
          %v821 = vpop.f32.mrf.mxu0
          %v822 = vpop.f32.mrf.mxu0
          %823 = vdwg.mxu0
          %v824 = vsel %vm536, %v819, -1e+30
          %v825 = vsel %vm537, %v824, -inf
          %826 = vmax.xlane.f32.xlu0 %v825
          %v827 = vpop.xlane.xlu0 %826
          %v828 = vmax.f32 %v519, %v827
          %v829 = vsub.f32 %v519, %v828
          %v830 = vmul.f32 %v829, 1.442695
          %v831 = vpow.pop %v830
          %v832 = vsub.f32 %v824, %v828
          %v833 = vmul.f32 %v832, 1.442695
          %v834 = vpow.pop %v833
          %v835 = vmul.f32 %v831, %v520
          %v836 = vsel %vm537, %v834, 0.0
          %837 = vadd.xlane.f32.xlu0 %v836
          %v838 = vpop.xlane.xlu0 %837
          %v839 = vadd.f32 %v835, %v838
          %v840 = vmul.f32 %v831, %v521
          %v841 = vpack.c.bf16 %v834, %v834
          %842 = vrot.lane.b32.xlu0 %v724, 112
          %v843 = vpop.permute.xlu0 %842
          %v845 = vsel %vm537, %v841, 0
          %v848 = vsel %vm605, %v843, 0
          %850 = vmatprep.subr.bf16.mxu0 0
          %851 = vmatpush1.bf16.msra.mxu0 0
          %852 = vmatprep.subr.bf16.mxu0 0
          %853 = vmatpush1.bf16.msra.mxu0 0
          %854 = vmatprep.subr.bf16.mxu0 0
          %855 = vmatpush1.bf16.msra.mxu0 0
          %856 = vmatprep.subr.bf16.mxu0 0
          %857 = vmatpush1.bf16.msra.mxu0 0
          %858 = vmatprep.subr.bf16.mxu0 0
          %859 = vmatpush1.bf16.msra.mxu0 0
          %860 = vmatprep.subr.bf16.mxu0 0
          %861 = vmatpush1.bf16.msra.mxu0 0
          %862 = vmatprep.subr.bf16.mxu0 0
          %863 = vmatpush1.bf16.msra.mxu0 0
          %864 = vmatprep.subr.bf16.mxu0 0
          %865 = vmatpush1.bf16.msra.mxu0 %v848
          %866 = vmatprep.subr.bf16.mxu0 0
          %867 = vmatpush2.bf16.msra.mxu0 0
          %868 = vmatprep.subr.bf16.mxu0 0
          %869 = vmatpush2.bf16.msra.mxu0 0
          %870 = vmatprep.subr.bf16.mxu0 0
          %871 = vmatpush2.bf16.msra.mxu0 0
          %872 = vmatprep.subr.bf16.mxu0 0
          %873 = vmatpush2.bf16.msra.mxu0 0
          %874 = vmatprep.subr.bf16.mxu0 0
          %875 = vmatpush2.bf16.msra.mxu0 0
          %876 = vmatprep.subr.bf16.mxu0 0
          %877 = vmatpush2.bf16.msra.mxu0 0
          %878 = vmatprep.subr.bf16.mxu0 0
          %879 = vmatpush2.bf16.msra.mxu0 0
          %880 = vmatprep.subr.bf16.mxu0 0
          %881 = vmatpush2.bf16.msra.mxu0 0
          %882 = vmatprep.mubr.bf16.mxu0 0
          %883 = vmatmul.mubr.bf16.gmra.mxu0 %v845
          %v884 = vpop.f32.mrf.mxu0
          %v885 = vadd.f32 0.0, %v884
          %v886 = vpop.f32.mrf.mxu0
          %v887 = vpop.f32.mrf.mxu0
          %v888 = vpop.f32.mrf.mxu0
          %889 = vdwg.mxu0
          %v890 = vadd.f32 %v840, %v885
          %891 = vrot.lane.b32.xlu0 %v425, 104
          %v892 = vpop.permute.xlu0 %891
          %893 = vrot.lane.b32.xlu0 %v655, 104
          %v894 = vpop.permute.xlu0 %893
          %v896 = vsel %vm537, %v892, 0
          %v899 = vsel %vm537, %v894, 0
          %901 = vmatprep.subr.bf16.mxu0 0
          %902 = vmatpush1.bf16.xpose.msra.mxu0 0
          %903 = vmatprep.subr.bf16.mxu0 0
          %904 = vmatpush1.bf16.xpose.msra.mxu0 0
          %905 = vmatprep.subr.bf16.mxu0 0
          %906 = vmatpush1.bf16.xpose.msra.mxu0 0
          %907 = vmatprep.subr.bf16.mxu0 0
          %908 = vmatpush1.bf16.xpose.msra.mxu0 0
          %909 = vmatprep.subr.bf16.mxu0 0
          %910 = vmatpush1.bf16.xpose.msra.mxu0 0
          %911 = vmatprep.subr.bf16.mxu0 0
          %912 = vmatpush1.bf16.xpose.msra.mxu0 0
          %913 = vmatprep.subr.bf16.mxu0 0
          %914 = vmatpush1.bf16.xpose.msra.mxu0 0
          %915 = vmatprep.subr.bf16.mxu0 0
          %916 = vmatpush1.bf16.xpose.msra.mxu0 %v899
          %917 = vmatprep.subr.bf16.mxu0 0
          %918 = vmatpush2.bf16.xpose.msra.mxu0 0
          %919 = vmatprep.subr.bf16.mxu0 0
          %920 = vmatpush2.bf16.xpose.msra.mxu0 0
          %921 = vmatprep.subr.bf16.mxu0 0
          %922 = vmatpush2.bf16.xpose.msra.mxu0 0
          %923 = vmatprep.subr.bf16.mxu0 0
          %924 = vmatpush2.bf16.xpose.msra.mxu0 0
          %925 = vmatprep.subr.bf16.mxu0 0
          %926 = vmatpush2.bf16.xpose.msra.mxu0 0
          %927 = vmatprep.subr.bf16.mxu0 0
          %928 = vmatpush2.bf16.xpose.msra.mxu0 0
          %929 = vmatprep.subr.bf16.mxu0 0
          %930 = vmatpush2.bf16.xpose.msra.mxu0 0
          %931 = vmatprep.subr.bf16.mxu0 0
          %932 = vmatpush2.bf16.xpose.msra.mxu0 0
          %933 = vmatprep.mubr.bf16.mxu0 0
          %934 = vmatmul.mubr.bf16.gmra.mxu0 %v896
          %v935 = vpop.f32.mrf.mxu0
          %v936 = vadd.f32 0.0, %v935
          %v937 = vpop.f32.mrf.mxu0
          %v938 = vpop.f32.mrf.mxu0
          %v939 = vpop.f32.mrf.mxu0
          %940 = vdwg.mxu0
          %v941 = vsel %vm536, %v936, -1e+30
          %v942 = vsel %vm537, %v941, -inf
          %943 = vmax.xlane.f32.xlu0 %v942
          %v944 = vpop.xlane.xlu0 %943
          %v945 = vmax.f32 %v522, %v944
          %v946 = vsub.f32 %v522, %v945
          %v947 = vmul.f32 %v946, 1.442695
          %v948 = vpow.pop %v947
          %v949 = vsub.f32 %v941, %v945
          %v950 = vmul.f32 %v949, 1.442695
          %v951 = vpow.pop %v950
          %v952 = vmul.f32 %v948, %v523
          %v953 = vsel %vm537, %v951, 0.0
          %954 = vadd.xlane.f32.xlu0 %v953
          %v955 = vpop.xlane.xlu0 %954
          %v956 = vadd.f32 %v952, %v955
          %v957 = vmul.f32 %v948, %v524
          %v958 = vpack.c.bf16 %v951, %v951
          %959 = vrot.lane.b32.xlu0 %v724, 104
          %v960 = vpop.permute.xlu0 %959
          %v962 = vsel %vm537, %v958, 0
          %v965 = vsel %vm605, %v960, 0
          %967 = vmatprep.subr.bf16.mxu0 0
          %968 = vmatpush1.bf16.msra.mxu0 0
          %969 = vmatprep.subr.bf16.mxu0 0
          %970 = vmatpush1.bf16.msra.mxu0 0
          %971 = vmatprep.subr.bf16.mxu0 0
          %972 = vmatpush1.bf16.msra.mxu0 0
          %973 = vmatprep.subr.bf16.mxu0 0
          %974 = vmatpush1.bf16.msra.mxu0 0
          %975 = vmatprep.subr.bf16.mxu0 0
          %976 = vmatpush1.bf16.msra.mxu0 0
          %977 = vmatprep.subr.bf16.mxu0 0
          %978 = vmatpush1.bf16.msra.mxu0 0
          %979 = vmatprep.subr.bf16.mxu0 0
          %980 = vmatpush1.bf16.msra.mxu0 0
          %981 = vmatprep.subr.bf16.mxu0 0
          %982 = vmatpush1.bf16.msra.mxu0 %v965
          %983 = vmatprep.subr.bf16.mxu0 0
          %984 = vmatpush2.bf16.msra.mxu0 0
          %985 = vmatprep.subr.bf16.mxu0 0
          %986 = vmatpush2.bf16.msra.mxu0 0
          %987 = vmatprep.subr.bf16.mxu0 0
          %988 = vmatpush2.bf16.msra.mxu0 0
          %989 = vmatprep.subr.bf16.mxu0 0
          %990 = vmatpush2.bf16.msra.mxu0 0
          %991 = vmatprep.subr.bf16.mxu0 0
          %992 = vmatpush2.bf16.msra.mxu0 0
          %993 = vmatprep.subr.bf16.mxu0 0
          %994 = vmatpush2.bf16.msra.mxu0 0
          %995 = vmatprep.subr.bf16.mxu0 0
          %996 = vmatpush2.bf16.msra.mxu0 0
          %997 = vmatprep.subr.bf16.mxu0 0
          %998 = vmatpush2.bf16.msra.mxu0 0
          %999 = vmatprep.mubr.bf16.mxu0 0
          %1000 = vmatmul.mubr.bf16.gmra.mxu0 %v962
          %v1001 = vpop.f32.mrf.mxu0
          %v1002 = vadd.f32 0.0, %v1001
          %v1003 = vpop.f32.mrf.mxu0
          %v1004 = vpop.f32.mrf.mxu0
          %v1005 = vpop.f32.mrf.mxu0
          %1006 = vdwg.mxu0
          %v1007 = vadd.f32 %v957, %v1002
        $region69: #{tpu_custom_call.1} parent=47 // loop_footer
          %s510 = sadd.s32 %s508, 1
        $region70: #{tpu_custom_call.1} parent=47 // loop_footer_branch
          %507 = sbr.rel target = $region66
        $region71: #{tpu_custom_call.1} parent=47 // loop_exit
          _
        %v1008 = vrcp.pop %v514
        %v1009 = vmul.f32 %v515, %v1008
        %vm1010 = vcmask 64512
        %1011 = vst.msk [vmem:[#allocation4] sm:$0xff] %vm1010, %v1009
        %v1012 = vrcp.pop %v517
        %v1013 = vmul.f32 %v518, %v1012
        %1015 = vrot.lane.b32.xlu0 %v1013, 8
        %v1016 = vpop.permute.xlu0 %1015
        %vm1018 = vcmask 130112
        %1019 = vst.msk [vmem:[#allocation4] sm:$0xff] %vm1018, %v1016
        %v1020 = vrcp.pop %v520
        %v1021 = vmul.f32 %v521, %v1020
        %1023 = vrot.lane.b32.xlu0 %v1021, 16
        %v1024 = vpop.permute.xlu0 %1023
        %vm1026 = vcmask 195712
        %1027 = vst.msk [vmem:[#allocation4] sm:$0xff] %vm1026, %v1024
        %v1028 = vrcp.pop %v523
        %v1029 = vmul.f32 %v524, %v1028
        %1031 = vrot.lane.b32.xlu0 %v1029, 24
        %v1032 = vpop.permute.xlu0 %1031
        %vm1034 = vcmask 261312
        %1035 = vst.msk [vmem:[#allocation4] sm:$0xff] %vm1034, %v1032
        %v1036 = vld [vmem:[#allocation4] sm:$0xff]
        %v1037 = vpack.c.bf16 %v1036, %v1036
        %v1038 = vld [vmem:[#allocation11] sm:$0xf]
        %v1039 = vld [vmem:[#allocation11 + $0x4] sm:$0xf]
        %v1040 = vld [vmem:[#allocation11 + $0x8] sm:$0xf]
        %v1041 = vld [vmem:[#allocation11 + $0xc] sm:$0xf]
        %v1042 = vld [vmem:[%s6] sm:$0x1]
        %v1044 = vlaneseq
        %v1045 = vshrl.u32 %v1044, 7
        %v1046 = vsub.s32 0, %v1045
        %v1047 = vrot.slane %v1042, %v1046
        %v1053 = vunpack.c.l.b16 %v1038
        %v1054 = vunpack.c.l.b16 %v1039
        %v1055 = vunpack.c.l.b16 %v1040
        %v1056 = vunpack.c.l.b16 %v1041
        %v1057 = vpack.c.b16 %v1054, %v1053
        %v1058 = vpack.c.b16 %v1056, %v1055
        %v1062 = vsel %vm381, %v1037, 0
        %1064 = vmatprep.subr.bf16.mxu0 0
        %1065 = vmatpush1.bf16.msra.mxu0 0
        %1066 = vmatprep.subr.bf16.mxu0 0
        %1067 = vmatpush1.bf16.msra.mxu0 0
        %1068 = vmatprep.subr.bf16.mxu0 0
        %1069 = vmatpush1.bf16.msra.mxu0 0
        %1070 = vmatprep.subr.bf16.mxu0 0
        %1071 = vmatpush1.bf16.msra.mxu0 0
        %1072 = vmatprep.subr.bf16.mxu0 0
        %1073 = vmatpush1.bf16.msra.mxu0 0
        %1074 = vmatprep.subr.bf16.mxu0 0
        %1075 = vmatpush1.bf16.msra.mxu0 0
        %1076 = vmatprep.subr.bf16.mxu0 0
        %1077 = vmatpush1.bf16.msra.mxu0 %v1058
        %1078 = vmatprep.subr.bf16.mxu0 0
        %1079 = vmatpush1.bf16.msra.mxu0 %v1057
        %1080 = vmatprep.subr.bf16.mxu0 0
        %1081 = vmatpush2.bf16.msra.mxu0 0
        %1082 = vmatprep.subr.bf16.mxu0 0
        %1083 = vmatpush2.bf16.msra.mxu0 0
        %1084 = vmatprep.subr.bf16.mxu0 0
        %1085 = vmatpush2.bf16.msra.mxu0 0
        %1086 = vmatprep.subr.bf16.mxu0 0
        %1087 = vmatpush2.bf16.msra.mxu0 0
        %1088 = vmatprep.subr.bf16.mxu0 0
        %1089 = vmatpush2.bf16.msra.mxu0 0
        %1090 = vmatprep.subr.bf16.mxu0 0
        %1091 = vmatpush2.bf16.msra.mxu0 0
        %1092 = vmatprep.subr.bf16.mxu0 0
        %1093 = vmatpush2.bf16.msra.mxu0 0
        %1094 = vmatprep.subr.bf16.mxu0 0
        %1095 = vmatpush2.bf16.msra.mxu0 0
        %1096 = vmatprep.mubr.bf16.mxu0 0
        %1097 = vmatmul.mubr.bf16.gmra.mxu0 %v1062
        %v1098 = vpop.f32.mrf.mxu0
        %v1099 = vadd.f32 %v1047, %v1098
        %v1100 = vpop.f32.mrf.mxu0
        %v1101 = vpop.f32.mrf.mxu0
        %v1102 = vpop.f32.mrf.mxu0
        %1103 = vdwg.mxu0
        %1104 = vst.msk [vmem:[%s354] sm:$0xff] %vm381, %v1099
        %s1105 = sand.u32 %s202, 1
        %s1106 = scalar_lea.sflag [#allocation7], %s1105
        %s1107 = sand.u32 %s202, 1
        %s1108 = smul.addr %s1107, 8
        %s1109 = scalar_lea.vmem [#allocation13], %s1108
        // Predicated region
        $region72: #{tpu_custom_call.1} parent=47 // pred_check
          %p1110 = pneg %p212
        $region73: #{tpu_custom_call.1} parent=47 // pred_check_branch
          %1112 = sbr.rel (%p1110) target = $region75
        $region74: #{tpu_custom_call.1} parent=47 // pred_region
          %s1114 = ssub.s32 128, 128
          %1115 = vsyncadd %s1106, %s1114
          %s1116 = sadd.s32 %s31, %s30
          %s1117 = smul.addr %s1116, 128
          %s1118 = scalar_lea.hbm %s7, %s1117
          %s1120 = sshll.u32 %s1109, 4
          %s1121 = int_to_ptr.vmem [resolvable:$true] %s1120
          %1123 = dma.vmem_to_hbm [thread:$0]  %s1121, 128, %s1118, %s1106
        $region75: #{tpu_custom_call.1} parent=47 // pred_fallthru
          _
      $region48: #{tpu_custom_call.1} parent=5 // pred_fallthru
        _
      %p1124 = scmp.le.s32.totalorder 2, %s21
      // Predicated region
      $region76: #{tpu_custom_call.1} parent=5 // pred_check
        %p1125 = pneg %p1124
      $region77: #{tpu_custom_call.1} parent=5 // pred_check_branch
        %1127 = sbr.rel (%p1125) target = $region79
      $region78: #{tpu_custom_call.1} parent=5 // pred_region
        %s1128 = ssub.s32 %s21, 2
        // Predicated region
        $region80: #{tpu_custom_call.1} parent=78 // pred_check
          %p1129 = pneg %p218
        $region81: #{tpu_custom_call.1} parent=78 // pred_check_branch
          %1131 = sbr.rel (%p1129) target = $region83
        $region82: #{tpu_custom_call.1} parent=78 // pred_region
          %s1132 = sand.u32 %s203, 1
          %s1133 = scalar_lea.sflag [#allocation7], %s1132
          %s1134 = sand.u32 %s203, 1
          %s1135 = smul.addr %s1134, 8
          %s1136 = scalar_lea.vmem [#allocation13], %s1135
          %1137 = dma.done %s1133, 128
        $region83: #{tpu_custom_call.1} parent=78 // pred_fallthru
          _
      $region79: #{tpu_custom_call.1} parent=5 // pred_fallthru
        _
    $region6: #{tpu_custom_call.1} parent=1 // loop_footer
      %s25 = sadd.s32 1, %s21
    $region7: #{tpu_custom_call.1} parent=1 // loop_footer_branch
      %20 = sbr.rel target = $region3
    $region8: #{tpu_custom_call.1} parent=1 // loop_exit
      _
    %1138 = vsyncpa [#allocation6], 1
    %s1139 = scalar_lea.sflag [#allocation6], 1
    %1140 = vsyncpa %s1139, 1
    %1141 = vsyncpa [#allocation9], 1
    %1142 = vsyncpa [#allocation12], 1
    %1143 = vsyncpa [#allocation7], 1
    %s1144 = scalar_lea.sflag [#allocation7], 1
    %1145 = vsyncpa %s1144, 1

</llo_original>
